<compile_context>
chip_gen: v7x
topology: tpu7x:2x2x1
jax: 0.10.0
libtpu: 0.0.40
codegen_flags: <defaults>
</compile_context>

<pallas_src>
import functools

import jax
import jax.numpy as jnp
from jax.experimental import pallas as pl
from jax.experimental.pallas import tpu as pltpu

LANE = 128  # lane-dense channel padding


def _round_up(n, m):
    return ((n + m - 1) // m) * m


def _pick_tile(m):
    # Rows per grid step.  512 hits ~85% of HBM roofline while staying far
    # under the 32 MiB scoped / 64 MiB physical VMEM budget of v7x (a
    # (512, 128) bf16 tile is 128 KiB).  TODO(synk): per-generation TILE_M
    # table (v5e/v6e could take 1024+) once shapes are realistic.
    for t in (512, 256, 128, 64, 32, 16, 8):
        if m % t == 0:
            return t
    return m


_PARALLEL = pltpu.CompilerParams(dimension_semantics=("parallel",))


# --------------------------------------------------------------------------- #
# K1: stem conv (as matmul on im2col rows) + swish, fused with 1x1 expand.
# --------------------------------------------------------------------------- #
def stem_expand_kernel(a_ref, sw_ref, sb_ref, ew_ref, eb_ref, resid_ref, h_ref):
    # a: (TM, 27) bf16, sw: (27, C1) bf16, ew: (C1, C2) bf16, biases f32.
    y = jnp.dot(a_ref[...], sw_ref[...], preferred_element_type=jnp.float32)
    y = y + sb_ref[...]
    y = y * jax.nn.sigmoid(y)                       # swish (f32 epilogue)
    resid_ref[...] = y.astype(jnp.bfloat16)         # MBConv residual input
    h = jnp.dot(y.astype(jnp.bfloat16), ew_ref[...],
                preferred_element_type=jnp.float32)
    h = h + eb_ref[...]
    h = h * jax.nn.sigmoid(h)
    h_ref[...] = h.astype(jnp.bfloat16)


def stem_expand(a, sw, sb, ew, eb):
    M, K = a.shape
    C1 = sw.shape[1]
    C2 = ew.shape[1]
    tm = _pick_tile(M)
    return pl.pallas_call(
        stem_expand_kernel,
        out_shape=(jax.ShapeDtypeStruct((M, C1), jnp.bfloat16),
                   jax.ShapeDtypeStruct((M, C2), jnp.bfloat16)),
        grid=(M // tm,),
        in_specs=[
            pl.BlockSpec((tm, K), lambda i: (i, 0)),
            pl.BlockSpec((K, C1), lambda i: (0, 0)),
            pl.BlockSpec((1, C1), lambda i: (0, 0)),
            pl.BlockSpec((C1, C2), lambda i: (0, 0)),
            pl.BlockSpec((1, C2), lambda i: (0, 0)),
        ],
        out_specs=(pl.BlockSpec((tm, C1), lambda i: (i, 0)),
                   pl.BlockSpec((tm, C2), lambda i: (i, 0))),
        compiler_params=_PARALLEL,
    )(a, sw, sb, ew, eb)


# --------------------------------------------------------------------------- #
# K2: depthwise 3x3 + swish + GAP + SE(reduce/expand) + scale + project +
#     residual add, per batch element.
# --------------------------------------------------------------------------- #
def mbconv_kernel(xpad_ref, resid_ref, dww_ref, dwb_ref, srw_ref, srb_ref,
                  sew_ref, seb_ref, pw_ref, pb_ref, o_ref, *, H, W):
    C = dww_ref.shape[1]
    x = xpad_ref[0].astype(jnp.float32)             # (H+2, W+2, C), halo of 1
    dww = dww_ref[...]                              # (9, C) f32, loaded once

    # 3x3 depthwise conv as 9 shifted in-VMEM accumulates (no HBM im2col).
    acc = x[0:H, 0:W, :] * dww[0:1]
    for t in range(1, 9):
        di, dj = divmod(t, 3)
        acc = acc + x[di:di + H, dj:dj + W, :] * dww[t:t + 1]
    acc = acc + dwb_ref[...]
    h = acc * jax.nn.sigmoid(acc)                   # swish, f32
    h2 = h.reshape(H * W, C)                        # (HW, C)

    # Squeeze & excite, fused (GAP is complete per batch element here).
    gap = jnp.mean(h2, axis=0, keepdims=True)       # (1, C)
    s = jnp.dot(gap.astype(jnp.bfloat16), srw_ref[...],
                preferred_element_type=jnp.float32) + srb_ref[...]
    s = s * jax.nn.sigmoid(s)                       # swish
    s = jnp.dot(s.astype(jnp.bfloat16), sew_ref[...],
                preferred_element_type=jnp.float32) + seb_ref[...]
    s = jax.nn.sigmoid(s)                           # (1, C) gate
    hs = (h2 * s).astype(jnp.bfloat16)

    # 1x1 projection + residual add.
    p = jnp.dot(hs, pw_ref[...], preferred_element_type=jnp.float32)
    p = p + pb_ref[...]
    y = p + resid_ref[0].astype(jnp.float32)
    o_ref[0] = y.astype(jnp.bfloat16)


def mbconv_block(xpad, resid, dww, dwb, srw, srb, sew, seb, pw, pb, H, W):
    B = xpad.shape[0]
    C2 = xpad.shape[-1]
    C1 = resid.shape[-1]
    CS = srw.shape[1]
    HW = H * W
    return pl.pallas_call(
        functools.partial(mbconv_kernel, H=H, W=W),
        out_shape=jax.ShapeDtypeStruct((B, HW, C1), jnp.bfloat16),
        grid=(B,),
        in_specs=[
            pl.BlockSpec((1, H + 2, W + 2, C2), lambda b: (b, 0, 0, 0)),
            pl.BlockSpec((1, HW, C1), lambda b: (b, 0, 0)),
            pl.BlockSpec((9, C2), lambda b: (0, 0)),
            pl.BlockSpec((1, C2), lambda b: (0, 0)),
            pl.BlockSpec((C2, CS), lambda b: (0, 0)),
            pl.BlockSpec((1, CS), lambda b: (0, 0)),
            pl.BlockSpec((CS, C2), lambda b: (0, 0)),
            pl.BlockSpec((1, C2), lambda b: (0, 0)),
            pl.BlockSpec((C2, C1), lambda b: (0, 0)),
            pl.BlockSpec((1, C1), lambda b: (0, 0)),
        ],
        out_specs=pl.BlockSpec((1, HW, C1), lambda b: (b, 0, 0)),
        compiler_params=_PARALLEL,
    )(xpad, resid, dww, dwb, srw, srb, sew, seb, pw, pb)


# --------------------------------------------------------------------------- #
# K3: head 1x1 conv + swish + global-avg-pool + myfc Linear, per batch element.
# --------------------------------------------------------------------------- #
def head_kernel(y_ref, hw_ref, hb_ref, fw_ref, fb_ref, o_ref):
    y = y_ref[0]                                    # (HW, C1) bf16
    h = jnp.dot(y, hw_ref[...], preferred_element_type=jnp.float32)
    h = h + hb_ref[...]
    h = h * jax.nn.sigmoid(h)                       # swish
    feat = jnp.mean(h, axis=0, keepdims=True)       # (1, CH)  == enet(x)
    logits = jnp.dot(feat.astype(jnp.bfloat16), fw_ref[...],
                     preferred_element_type=jnp.float32) + fb_ref[...]
    o_ref[0] = logits                               # (1, CO) f32


def head_pool_fc(y, hw, hb, fw, fb):
    B, HW, C1 = y.shape
    CH = hw.shape[1]
    CO = fw.shape[1]
    return pl.pallas_call(
        head_kernel,
        out_shape=jax.ShapeDtypeStruct((B, 1, CO), jnp.float32),
        grid=(B,),
        in_specs=[
            pl.BlockSpec((1, HW, C1), lambda b: (b, 0, 0)),
            pl.BlockSpec((C1, CH), lambda b: (0, 0)),
            pl.BlockSpec((1, CH), lambda b: (0, 0)),
            pl.BlockSpec((CH, CO), lambda b: (0, 0)),
            pl.BlockSpec((1, CO), lambda b: (0, 0)),
        ],
        out_specs=pl.BlockSpec((1, 1, CO), lambda b: (b, 0, 0)),
        compiler_params=_PARALLEL,
    )(y, hw, hb, fw, fb)


# ------------------------------- glue (JAX) -------------------------------- #
def im2col(x, kh, kw, stride, pad):
    # x: (B, H, W, C) NHWC -> (B, Ho, Wo, kh*kw, C).  Only used for the tiny
    # stem conv (Cin=3); the depthwise conv uses a halo window instead.
    x = jnp.pad(x, ((0, 0), (pad, pad), (pad, pad), (0, 0)))
    _, H, W, _ = x.shape
    Ho = (H - kh) // stride + 1
    Wo = (W - kw) // stride + 1
    taps = []
    for i in range(kh):
        for j in range(kw):
            taps.append(x[:, i:i + stride * Ho:stride, j:j + stride * Wo:stride, :])
    return jnp.stack(taps, axis=3), Ho, Wo


def fold_bn(w, gamma, beta, mean, var, eps=1e-3):
    scale = gamma / jnp.sqrt(var + eps)
    return w * scale[None, :], beta - mean * scale


def make_params(key, in_ch=3, stem_ch=8, head_ch=32, out_dim=5):
    exp_ch = stem_ch * 4
    se_ch = max(1, stem_ch // 4)
    ks = jax.random.split(key, 16)

    def nrm(k, shape, scale=0.1):
        return scale * jax.random.normal(k, shape, jnp.float32)

    def bn(k, c):
        k1, k2, k3 = jax.random.split(k, 3)
        gamma = 1.0 + 0.1 * jax.random.normal(k1, (c,), jnp.float32)
        beta = 0.1 * jax.random.normal(k2, (c,), jnp.float32)
        mean = 0.1 * jax.random.normal(k3, (c,), jnp.float32)
        var = jnp.ones((c,), jnp.float32)
        return gamma, beta, mean, var

    def pad_w(w, r, c):   # zero-pad weight to lane-dense (r, c)
        return jnp.pad(w, ((0, r - w.shape[0]), (0, c - w.shape[1])))

    def pad_b(b, c):      # zero-pad bias to (1, c)
        return jnp.pad(b.reshape(1, -1), ((0, 0), (0, c - b.shape[0])))

    C1 = _round_up(stem_ch, LANE)
    C2 = _round_up(exp_ch, LANE)
    CS = _round_up(se_ch, LANE)
    CH = _round_up(head_ch, LANE)
    CO = _round_up(out_dim, LANE)

    P = {}
    w, b = fold_bn(nrm(ks[0], (9 * in_ch, stem_ch)), *bn(ks[1], stem_ch))
    P["stem_w"] = pad_w(w, 9 * in_ch, C1).astype(jnp.bfloat16)
    P["stem_b"] = pad_b(b, C1)
    w, b = fold_bn(nrm(ks[2], (stem_ch, exp_ch)), *bn(ks[3], exp_ch))
    P["exp_w"] = pad_w(w, C1, C2).astype(jnp.bfloat16)
    P["exp_b"] = pad_b(b, C2)
    w, b = fold_bn(nrm(ks[4], (9, exp_ch)), *bn(ks[5], exp_ch))
    P["dw_w"] = pad_w(w, 9, C2)                 # f32: depthwise runs on the VPU
    P["dw_b"] = pad_b(b, C2)
    P["se_r_w"] = pad_w(nrm(ks[6], (exp_ch, se_ch)), C2, CS).astype(jnp.bfloat16)
    P["se_r_b"] = pad_b(nrm(ks[7], (se_ch,)), CS)
    P["se_e_w"] = pad_w(nrm(ks[8], (se_ch, exp_ch)), CS, C2).astype(jnp.bfloat16)
    P["se_e_b"] = pad_b(nrm(ks[9], (exp_ch,)), C2)
    w, b = fold_bn(nrm(ks[10], (exp_ch, stem_ch)), *bn(ks[11], stem_ch))
    P["proj_w"] = pad_w(w, C2, C1).astype(jnp.bfloat16)
    P["proj_b"] = pad_b(b, C1)
    w, b = fold_bn(nrm(ks[12], (stem_ch, head_ch)), *bn(ks[13], head_ch))
    P["head_w"] = pad_w(w, C1, CH).astype(jnp.bfloat16)
    P["head_b"] = pad_b(b, CH)
    P["fc_w"] = pad_w(nrm(ks[14], (head_ch, out_dim)), CH, CO).astype(jnp.bfloat16)
    P["fc_b"] = pad_b(nrm(ks[15], (out_dim,)), CO)
    return P


@functools.partial(jax.jit, static_argnames=("out_dim",))
def enetv2_forward(x_nchw, P, out_dim=5):
    # x_nchw: (B, C, H, W) like PyTorch; convert once to NHWC.
    x = jnp.transpose(x_nchw, (0, 2, 3, 1)).astype(jnp.float32)
    B, _, _, Cin = x.shape

    # ---- stem (3x3 s2) + expand (1x1), fused matmul kernel ----
    p, Ho, Wo = im2col(x, 3, 3, 2, 1)
    a = p.reshape(B * Ho * Wo, 9 * Cin).astype(jnp.bfloat16)
    resid, h = stem_expand(a, P["stem_w"], P["stem_b"], P["exp_w"], P["exp_b"])
    C1, C2 = resid.shape[1], h.shape[1]

    # ---- MBConv: dwconv + SE + project + residual in ONE kernel ----
    # Halo pad (1 px) instead of a 9x im2col expansion in HBM.
    hpad = jnp.pad(h.reshape(B, Ho, Wo, C2), ((0, 0), (1, 1), (1, 1), (0, 0)))
    resid3 = resid.reshape(B, Ho * Wo, C1)
    y = mbconv_block(hpad, resid3, P["dw_w"], P["dw_b"],
                     P["se_r_w"], P["se_r_b"], P["se_e_w"], P["se_e_b"],
                     P["proj_w"], P["proj_b"], Ho, Wo)

    # ---- head 1x1 + swish + GAP (== enet(x)) + myfc, fused ----
    logits_pad = head_pool_fc(y, P["head_w"], P["head_b"], P["fc_w"], P["fc_b"])
    return logits_pad.reshape(B, -1)[:, :out_dim].astype(jnp.float32)


if __name__ == "__main__":
    key = jax.random.PRNGKey(0)
    x = jax.random.normal(key, (2, 3, 16, 16), jnp.float32)   # NCHW like PyTorch
    params = make_params(jax.random.PRNGKey(42), in_ch=3, stem_ch=8,
                         head_ch=32, out_dim=5)
    out = enetv2_forward(x, params, out_dim=5)
    jax.block_until_ready(out)
    assert out.shape == (2, 5) and out.dtype == jnp.float32
    assert bool(jnp.all(jnp.isfinite(out)))
    print("KERNEL_OK")
</pallas_src>

<mosaic_0001>
module attributes {stable_mosaic.version = 11 : i64} {
  func.func @stem_expand_kernel(%arg0: i32, %arg1: memref<128x27xbf16, #tpu.memory_space<vmem>>, %arg2: memref<27x128xbf16, #tpu.memory_space<vmem>>, %arg3: memref<1x128xf32, #tpu.memory_space<vmem>>, %arg4: memref<128x128xbf16, #tpu.memory_space<vmem>>, %arg5: memref<1x128xf32, #tpu.memory_space<vmem>>, %arg6: memref<128x128xbf16, #tpu.memory_space<vmem>>, %arg7: memref<128x128xbf16, #tpu.memory_space<vmem>>) attributes {dimension_semantics = [#tpu.dimension_semantics<parallel>], iteration_bounds = array<i64: 1>, scalar_prefetch = 0 : i64, scratch_operands = 0 : i64, tpu.core_type = #tpu.core_type<tc>, window_params = [{transform_indices = @transform_0, window_bounds = array<i64: 128, 27>}, {pipeline_mode = #tpu.pipeline_mode<synchronous>, transform_indices = @transform_1, window_bounds = array<i64: 27, 128>}, {pipeline_mode = #tpu.pipeline_mode<synchronous>, transform_indices = @transform_2, window_bounds = array<i64: 1, 128>}, {pipeline_mode = #tpu.pipeline_mode<synchronous>, transform_indices = @transform_3, window_bounds = array<i64: 128, 128>}, {pipeline_mode = #tpu.pipeline_mode<synchronous>, transform_indices = @transform_4, window_bounds = array<i64: 1, 128>}, {transform_indices = @transform_5, window_bounds = array<i64: 128, 128>}, {transform_indices = @transform_6, window_bounds = array<i64: 128, 128>}]} {
    %c0 = arith.constant 0 : index
    %c0_0 = arith.constant 0 : index
    %0 = vector.load %arg1[%c0, %c0_0] : memref<128x27xbf16, #tpu.memory_space<vmem>>, vector<128x27xbf16>
    %c0_1 = arith.constant 0 : index
    %c0_2 = arith.constant 0 : index
    %1 = vector.load %arg2[%c0_1, %c0_2] : memref<27x128xbf16, #tpu.memory_space<vmem>>, vector<27x128xbf16>
    %cst = arith.constant dense<0.000000e+00> : vector<128x128xf32>
    %2 = tpu.matmul %0, %1, %cst {dimension_numbers = #tpu.dot_dimension_numbers<[1], [0], [0], [1], [0, 0, 1, 1], [], []>} : vector<128x27xbf16>, vector<27x128xbf16>, vector<128x128xf32> -> vector<128x128xf32>
    %c0_3 = arith.constant 0 : index
    %c0_4 = arith.constant 0 : index
    %3 = vector.load %arg3[%c0_3, %c0_4] : memref<1x128xf32, #tpu.memory_space<vmem>>, vector<1x128xf32>
    %4 = vector.broadcast %3 : vector<1x128xf32> to vector<128x128xf32>
    %5 = arith.addf %2, %4 : vector<128x128xf32>
    %6 = arith.negf %5 : vector<128x128xf32>
    %7 = math.exp %6 : vector<128x128xf32>
    %cst_5 = arith.constant 1.000000e+00 : f32
    %8 = vector.broadcast %cst_5 : f32 to vector<128x128xf32>
    %9 = arith.addf %8, %7 : vector<128x128xf32>
    %10 = arith.divf %8, %9 : vector<128x128xf32>
    %11 = arith.mulf %5, %10 : vector<128x128xf32>
    %12 = arith.truncf %11 : vector<128x128xf32> to vector<128x128xbf16>
    %c0_6 = arith.constant 0 : index
    %c0_7 = arith.constant 0 : index
    %13 = vector.load %arg6[%c0_6, %c0_7] : memref<128x128xbf16, #tpu.memory_space<vmem>>, vector<128x128xbf16>
    tpu.vector_store %arg6[%c0_6, %c0_7], %12 {strides = array<i32>} : memref<128x128xbf16, #tpu.memory_space<vmem>>, vector<128x128xbf16>,
    %14 = arith.truncf %11 : vector<128x128xf32> to vector<128x128xbf16>
    %c0_8 = arith.constant 0 : index
    %c0_9 = arith.constant 0 : index
    %15 = vector.load %arg4[%c0_8, %c0_9] : memref<128x128xbf16, #tpu.memory_space<vmem>>, vector<128x128xbf16>
    %cst_10 = arith.constant dense<0.000000e+00> : vector<128x128xf32>
    %16 = tpu.matmul %14, %15, %cst_10 {dimension_numbers = #tpu.dot_dimension_numbers<[1], [0], [0], [1], [0, 0, 1, 1], [], []>} : vector<128x128xbf16>, vector<128x128xbf16>, vector<128x128xf32> -> vector<128x128xf32>
    %c0_11 = arith.constant 0 : index
    %c0_12 = arith.constant 0 : index
    %17 = vector.load %arg5[%c0_11, %c0_12] : memref<1x128xf32, #tpu.memory_space<vmem>>, vector<1x128xf32>
    %18 = vector.broadcast %17 : vector<1x128xf32> to vector<128x128xf32>
    %19 = arith.addf %16, %18 : vector<128x128xf32>
    %20 = arith.negf %19 : vector<128x128xf32>
    %21 = math.exp %20 : vector<128x128xf32>
    %cst_13 = arith.constant 1.000000e+00 : f32
    %22 = vector.broadcast %cst_13 : f32 to vector<128x128xf32>
    %23 = arith.addf %22, %21 : vector<128x128xf32>
    %24 = arith.divf %22, %23 : vector<128x128xf32>
    %25 = arith.mulf %19, %24 : vector<128x128xf32>
    %26 = arith.truncf %25 : vector<128x128xf32> to vector<128x128xbf16>
    %c0_14 = arith.constant 0 : index
    %c0_15 = arith.constant 0 : index
    %27 = vector.load %arg7[%c0_14, %c0_15] : memref<128x128xbf16, #tpu.memory_space<vmem>>, vector<128x128xbf16>
    tpu.vector_store %arg7[%c0_14, %c0_15], %26 {strides = array<i32>} : memref<128x128xbf16, #tpu.memory_space<vmem>>, vector<128x128xbf16>,
    return
  }
  func.func @transform_0(%arg0: i32) -> (i32, i32) {
    %c0_i32 = arith.constant 0 : i32
    %c0_i32_0 = arith.constant 0 : i32
    return %arg0, %c0_i32 : i32, i32
  }
  func.func @transform_1(%arg0: i32) -> (i32, i32) {
    %c0_i32 = arith.constant 0 : i32
    %c0_i32_0 = arith.constant 0 : i32
    %c0_i32_1 = arith.constant 0 : i32
    return %c0_i32, %c0_i32_0 : i32, i32
  }
  func.func @transform_2(%arg0: i32) -> (i32, i32) {
    %c0_i32 = arith.constant 0 : i32
    %c0_i32_0 = arith.constant 0 : i32
    %c0_i32_1 = arith.constant 0 : i32
    return %c0_i32, %c0_i32_0 : i32, i32
  }
  func.func @transform_3(%arg0: i32) -> (i32, i32) {
    %c0_i32 = arith.constant 0 : i32
    %c0_i32_0 = arith.constant 0 : i32
    %c0_i32_1 = arith.constant 0 : i32
    return %c0_i32, %c0_i32_0 : i32, i32
  }
  func.func @transform_4(%arg0: i32) -> (i32, i32) {
    %c0_i32 = arith.constant 0 : i32
    %c0_i32_0 = arith.constant 0 : i32
    %c0_i32_1 = arith.constant 0 : i32
    return %c0_i32, %c0_i32_0 : i32, i32
  }
  func.func @transform_5(%arg0: i32) -> (i32, i32) {
    %c0_i32 = arith.constant 0 : i32
    %c0_i32_0 = arith.constant 0 : i32
    return %arg0, %c0_i32 : i32, i32
  }
  func.func @transform_6(%arg0: i32) -> (i32, i32) {
    %c0_i32 = arith.constant 0 : i32
    %c0_i32_0 = arith.constant 0 : i32
    return %arg0, %c0_i32 : i32, i32
  }
}

module attributes {stable_mosaic.version = 11 : i64} {
  func.func @mbconv_kernel(%arg0: i32, %arg1: memref<1x10x10x128xbf16, #tpu.memory_space<vmem>>, %arg2: memref<1x64x128xbf16, #tpu.memory_space<vmem>>, %arg3: memref<9x128xf32, #tpu.memory_space<vmem>>, %arg4: memref<1x128xf32, #tpu.memory_space<vmem>>, %arg5: memref<128x128xbf16, #tpu.memory_space<vmem>>, %arg6: memref<1x128xf32, #tpu.memory_space<vmem>>, %arg7: memref<128x128xbf16, #tpu.memory_space<vmem>>, %arg8: memref<1x128xf32, #tpu.memory_space<vmem>>, %arg9: memref<128x128xbf16, #tpu.memory_space<vmem>>, %arg10: memref<1x128xf32, #tpu.memory_space<vmem>>, %arg11: memref<1x64x128xbf16, #tpu.memory_space<vmem>>) attributes {dimension_semantics = [#tpu.dimension_semantics<parallel>], iteration_bounds = array<i64: 2>, scalar_prefetch = 0 : i64, scratch_operands = 0 : i64, tpu.core_type = #tpu.core_type<tc>, window_params = [{transform_indices = @transform_0, window_bounds = array<i64: 1, 10, 10, 128>}, {transform_indices = @transform_1, window_bounds = array<i64: 1, 64, 128>}, {pipeline_mode = #tpu.pipeline_mode<synchronous>, transform_indices = @transform_2, window_bounds = array<i64: 9, 128>}, {pipeline_mode = #tpu.pipeline_mode<synchronous>, transform_indices = @transform_3, window_bounds = array<i64: 1, 128>}, {pipeline_mode = #tpu.pipeline_mode<synchronous>, transform_indices = @transform_4, window_bounds = array<i64: 128, 128>}, {pipeline_mode = #tpu.pipeline_mode<synchronous>, transform_indices = @transform_5, window_bounds = array<i64: 1, 128>}, {pipeline_mode = #tpu.pipeline_mode<synchronous>, transform_indices = @transform_6, window_bounds = array<i64: 128, 128>}, {pipeline_mode = #tpu.pipeline_mode<synchronous>, transform_indices = @transform_7, window_bounds = array<i64: 1, 128>}, {pipeline_mode = #tpu.pipeline_mode<synchronous>, transform_indices = @transform_8, window_bounds = array<i64: 128, 128>}, {pipeline_mode = #tpu.pipeline_mode<synchronous>, transform_indices = @transform_9, window_bounds = array<i64: 1, 128>}, {transform_indices = @transform_10, window_bounds = array<i64: 1, 64, 128>}]} {
    %c0 = arith.constant 0 : index
    %c0_0 = arith.constant 0 : index
    %c0_1 = arith.constant 0 : index
    %c0_2 = arith.constant 0 : index
    %0 = vector.load %arg1[%c0, %c0_0, %c0_1, %c0_2] : memref<1x10x10x128xbf16, #tpu.memory_space<vmem>>, vector<1x10x10x128xbf16>
    %1 = vector.shape_cast %0 : vector<1x10x10x128xbf16> to vector<10x10x128xbf16>
    %2 = arith.extf %1 : vector<10x10x128xbf16> to vector<10x10x128xf32>
    %c0_3 = arith.constant 0 : index
    %c0_4 = arith.constant 0 : index
    %3 = vector.load %arg3[%c0_3, %c0_4] : memref<9x128xf32, #tpu.memory_space<vmem>>, vector<9x128xf32>
    %4 = vector.extract_strided_slice %2 {offsets = [0, 0, 0], sizes = [8, 8, 128], strides = [1, 1, 1]} : vector<10x10x128xf32> to vector<8x8x128xf32>
    %5 = vector.extract_strided_slice %3 {offsets = [0, 0], sizes = [1, 128], strides = [1, 1]} : vector<9x128xf32> to vector<1x128xf32>
    %6 = vector.shape_cast %5 : vector<1x128xf32> to vector<1x1x128xf32>
    %7 = vector.broadcast %6 : vector<1x1x128xf32> to vector<8x8x128xf32>
    %8 = arith.mulf %4, %7 : vector<8x8x128xf32>
    %9 = vector.extract_strided_slice %2 {offsets = [0, 1, 0], sizes = [8, 8, 128], strides = [1, 1, 1]} : vector<10x10x128xf32> to vector<8x8x128xf32>
    %10 = vector.extract_strided_slice %3 {offsets = [1, 0], sizes = [1, 128], strides = [1, 1]} : vector<9x128xf32> to vector<1x128xf32>
    %11 = vector.shape_cast %10 : vector<1x128xf32> to vector<1x1x128xf32>
    %12 = vector.broadcast %11 : vector<1x1x128xf32> to vector<8x8x128xf32>
    %13 = arith.mulf %9, %12 : vector<8x8x128xf32>
    %14 = arith.addf %8, %13 : vector<8x8x128xf32>
    %15 = vector.extract_strided_slice %2 {offsets = [0, 2, 0], sizes = [8, 8, 128], strides = [1, 1, 1]} : vector<10x10x128xf32> to vector<8x8x128xf32>
    %16 = vector.extract_strided_slice %3 {offsets = [2, 0], sizes = [1, 128], strides = [1, 1]} : vector<9x128xf32> to vector<1x128xf32>
    %17 = vector.shape_cast %16 : vector<1x128xf32> to vector<1x1x128xf32>
    %18 = vector.broadcast %17 : vector<1x1x128xf32> to vector<8x8x128xf32>
    %19 = arith.mulf %15, %18 : vector<8x8x128xf32>
    %20 = arith.addf %14, %19 : vector<8x8x128xf32>
    %21 = vector.extract_strided_slice %2 {offsets = [1, 0, 0], sizes = [8, 8, 128], strides = [1, 1, 1]} : vector<10x10x128xf32> to vector<8x8x128xf32>
    %22 = vector.extract_strided_slice %3 {offsets = [3, 0], sizes = [1, 128], strides = [1, 1]} : vector<9x128xf32> to vector<1x128xf32>
    %23 = vector.shape_cast %22 : vector<1x128xf32> to vector<1x1x128xf32>
    %24 = vector.broadcast %23 : vector<1x1x128xf32> to vector<8x8x128xf32>
    %25 = arith.mulf %21, %24 : vector<8x8x128xf32>
    %26 = arith.addf %20, %25 : vector<8x8x128xf32>
    %27 = vector.extract_strided_slice %2 {offsets = [1, 1, 0], sizes = [8, 8, 128], strides = [1, 1, 1]} : vector<10x10x128xf32> to vector<8x8x128xf32>
    %28 = vector.extract_strided_slice %3 {offsets = [4, 0], sizes = [1, 128], strides = [1, 1]} : vector<9x128xf32> to vector<1x128xf32>
    %29 = vector.shape_cast %28 : vector<1x128xf32> to vector<1x1x128xf32>
    %30 = vector.broadcast %29 : vector<1x1x128xf32> to vector<8x8x128xf32>
    %31 = arith.mulf %27, %30 : vector<8x8x128xf32>
    %32 = arith.addf %26, %31 : vector<8x8x128xf32>
    %33 = vector.extract_strided_slice %2 {offsets = [1, 2, 0], sizes = [8, 8, 128], strides = [1, 1, 1]} : vector<10x10x128xf32> to vector<8x8x128xf32>
    %34 = vector.extract_strided_slice %3 {offsets = [5, 0], sizes = [1, 128], strides = [1, 1]} : vector<9x128xf32> to vector<1x128xf32>
    %35 = vector.shape_cast %34 : vector<1x128xf32> to vector<1x1x128xf32>
    %36 = vector.broadcast %35 : vector<1x1x128xf32> to vector<8x8x128xf32>
    %37 = arith.mulf %33, %36 : vector<8x8x128xf32>
    %38 = arith.addf %32, %37 : vector<8x8x128xf32>
    %39 = vector.extract_strided_slice %2 {offsets = [2, 0, 0], sizes = [8, 8, 128], strides = [1, 1, 1]} : vector<10x10x128xf32> to vector<8x8x128xf32>
    %40 = vector.extract_strided_slice %3 {offsets = [6, 0], sizes = [1, 128], strides = [1, 1]} : vector<9x128xf32> to vector<1x128xf32>
    %41 = vector.shape_cast %40 : vector<1x128xf32> to vector<1x1x128xf32>
    %42 = vector.broadcast %41 : vector<1x1x128xf32> to vector<8x8x128xf32>
    %43 = arith.mulf %39, %42 : vector<8x8x128xf32>
    %44 = arith.addf %38, %43 : vector<8x8x128xf32>
    %45 = vector.extract_strided_slice %2 {offsets = [2, 1, 0], sizes = [8, 8, 128], strides = [1, 1, 1]} : vector<10x10x128xf32> to vector<8x8x128xf32>
    %46 = vector.extract_strided_slice %3 {offsets = [7, 0], sizes = [1, 128], strides = [1, 1]} : vector<9x128xf32> to vector<1x128xf32>
    %47 = vector.shape_cast %46 : vector<1x128xf32> to vector<1x1x128xf32>
    %48 = vector.broadcast %47 : vector<1x1x128xf32> to vector<8x8x128xf32>
    %49 = arith.mulf %45, %48 : vector<8x8x128xf32>
    %50 = arith.addf %44, %49 : vector<8x8x128xf32>
    %51 = vector.extract_strided_slice %2 {offsets = [2, 2, 0], sizes = [8, 8, 128], strides = [1, 1, 1]} : vector<10x10x128xf32> to vector<8x8x128xf32>
    %52 = vector.extract_strided_slice %3 {offsets = [8, 0], sizes = [1, 128], strides = [1, 1]} : vector<9x128xf32> to vector<1x128xf32>
    %53 = vector.shape_cast %52 : vector<1x128xf32> to vector<1x1x128xf32>
    %54 = vector.broadcast %53 : vector<1x1x128xf32> to vector<8x8x128xf32>
    %55 = arith.mulf %51, %54 : vector<8x8x128xf32>
    %56 = arith.addf %50, %55 : vector<8x8x128xf32>
    %c0_5 = arith.constant 0 : index
    %c0_6 = arith.constant 0 : index
    %57 = vector.load %arg4[%c0_5, %c0_6] : memref<1x128xf32, #tpu.memory_space<vmem>>, vector<1x128xf32>
    %58 = vector.shape_cast %57 : vector<1x128xf32> to vector<1x1x128xf32>
    %59 = vector.broadcast %58 : vector<1x1x128xf32> to vector<8x8x128xf32>
    %60 = arith.addf %56, %59 : vector<8x8x128xf32>
    %61 = arith.negf %60 : vector<8x8x128xf32>
    %62 = math.exp %61 : vector<8x8x128xf32>
    %cst = arith.constant 1.000000e+00 : f32
    %63 = vector.broadcast %cst : f32 to vector<8x8x128xf32>
    %64 = arith.addf %63, %62 : vector<8x8x128xf32>
    %65 = arith.divf %63, %64 : vector<8x8x128xf32>
    %66 = arith.mulf %60, %65 : vector<8x8x128xf32>
    %67 = vector.shape_cast %66 : vector<8x8x128xf32> to vector<64x128xf32>
    %cst_7 = arith.constant dense<0.000000e+00> : vector<128xf32>
    %68 = vector.multi_reduction <add>, %67, %cst_7 [0] : vector<64x128xf32> to vector<128xf32>
    %69 = vector.shape_cast %68 : vector<128xf32> to vector<1x128xf32>
    %cst_8 = arith.constant 6.400000e+01 : f32
    %70 = vector.broadcast %cst_8 : f32 to vector<1x128xf32>
    %71 = arith.divf %69, %70 : vector<1x128xf32>
    %72 = arith.truncf %71 : vector<1x128xf32> to vector<1x128xbf16>
    %c0_9 = arith.constant 0 : index
    %c0_10 = arith.constant 0 : index
    %73 = vector.load %arg5[%c0_9, %c0_10] : memref<128x128xbf16, #tpu.memory_space<vmem>>, vector<128x128xbf16>
    %cst_11 = arith.constant dense<0.000000e+00> : vector<1x128xf32>
    %74 = tpu.matmul %72, %73, %cst_11 {dimension_numbers = #tpu.dot_dimension_numbers<[1], [0], [0], [1], [0, 0, 1, 1], [], []>} : vector<1x128xbf16>, vector<128x128xbf16>, vector<1x128xf32> -> vector<1x128xf32>
    %c0_12 = arith.constant 0 : index
    %c0_13 = arith.constant 0 : index
    %75 = vector.load %arg6[%c0_12, %c0_13] : memref<1x128xf32, #tpu.memory_space<vmem>>, vector<1x128xf32>
    %76 = arith.addf %74, %75 : vector<1x128xf32>
    %77 = arith.negf %76 : vector<1x128xf32>
    %78 = math.exp %77 : vector<1x128xf32>
    %cst_14 = arith.constant 1.000000e+00 : f32
    %79 = vector.broadcast %cst_14 : f32 to vector<1x128xf32>
    %80 = arith.addf %79, %78 : vector<1x128xf32>
    %81 = arith.divf %79, %80 : vector<1x128xf32>
    %82 = arith.mulf %76, %81 : vector<1x128xf32>
    %83 = arith.truncf %82 : vector<1x128xf32> to vector<1x128xbf16>
    %c0_15 = arith.constant 0 : index
    %c0_16 = arith.constant 0 : index
    %84 = vector.load %arg7[%c0_15, %c0_16] : memref<128x128xbf16, #tpu.memory_space<vmem>>, vector<128x128xbf16>
    %cst_17 = arith.constant dense<0.000000e+00> : vector<1x128xf32>
    %85 = tpu.matmul %83, %84, %cst_17 {dimension_numbers = #tpu.dot_dimension_numbers<[1], [0], [0], [1], [0, 0, 1, 1], [], []>} : vector<1x128xbf16>, vector<128x128xbf16>, vector<1x128xf32> -> vector<1x128xf32>
    %c0_18 = arith.constant 0 : index
    %c0_19 = arith.constant 0 : index
    %86 = vector.load %arg8[%c0_18, %c0_19] : memref<1x128xf32, #tpu.memory_space<vmem>>, vector<1x128xf32>
    %87 = arith.addf %85, %86 : vector<1x128xf32>
    %88 = arith.negf %87 : vector<1x128xf32>
    %89 = math.exp %88 : vector<1x128xf32>
    %cst_20 = arith.constant 1.000000e+00 : f32
    %90 = vector.broadcast %cst_20 : f32 to vector<1x128xf32>
    %91 = arith.addf %90, %89 : vector<1x128xf32>
    %92 = arith.divf %90, %91 : vector<1x128xf32>
    %93 = vector.broadcast %92 : vector<1x128xf32> to vector<64x128xf32>
    %94 = arith.mulf %67, %93 : vector<64x128xf32>
    %95 = arith.truncf %94 : vector<64x128xf32> to vector<64x128xbf16>
    %c0_21 = arith.constant 0 : index
    %c0_22 = arith.constant 0 : index
    %96 = vector.load %arg9[%c0_21, %c0_22] : memref<128x128xbf16, #tpu.memory_space<vmem>>, vector<128x128xbf16>
    %cst_23 = arith.constant dense<0.000000e+00> : vector<64x128xf32>
    %97 = tpu.matmul %95, %96, %cst_23 {dimension_numbers = #tpu.dot_dimension_numbers<[1], [0], [0], [1], [0, 0, 1, 1], [], []>} : vector<64x128xbf16>, vector<128x128xbf16>, vector<64x128xf32> -> vector<64x128xf32>
    %c0_24 = arith.constant 0 : index
    %c0_25 = arith.constant 0 : index
    %98 = vector.load %arg10[%c0_24, %c0_25] : memref<1x128xf32, #tpu.memory_space<vmem>>, vector<1x128xf32>
    %99 = vector.broadcast %98 : vector<1x128xf32> to vector<64x128xf32>
    %100 = arith.addf %97, %99 : vector<64x128xf32>
    %c0_26 = arith.constant 0 : index
    %c0_27 = arith.constant 0 : index
    %c0_28 = arith.constant 0 : index
    %101 = vector.load %arg2[%c0_26, %c0_27, %c0_28] : memref<1x64x128xbf16, #tpu.memory_space<vmem>>, vector<1x64x128xbf16>
    %102 = vector.shape_cast %101 : vector<1x64x128xbf16> to vector<64x128xbf16>
    %103 = arith.extf %102 : vector<64x128xbf16> to vector<64x128xf32>
    %104 = arith.addf %100, %103 : vector<64x128xf32>
    %105 = arith.truncf %104 : vector<64x128xf32> to vector<64x128xbf16>
    %c0_29 = arith.constant 0 : index
    %c0_30 = arith.constant 0 : index
    %c0_31 = arith.constant 0 : index
    %106 = vector.load %arg11[%c0_29, %c0_30, %c0_31] : memref<1x64x128xbf16, #tpu.memory_space<vmem>>, vector<1x64x128xbf16>
    %107 = vector.shape_cast %106 : vector<1x64x128xbf16> to vector<64x128xbf16>
    %108 = vector.shape_cast %105 : vector<64x128xbf16> to vector<1x64x128xbf16>
    tpu.vector_store %arg11[%c0_29, %c0_30, %c0_31], %108 {strides = array<i32>} : memref<1x64x128xbf16, #tpu.memory_space<vmem>>, vector<1x64x128xbf16>,
    return
  }
  func.func @transform_0(%arg0: i32) -> (i32, i32, i32, i32) {
    %c0_i32 = arith.constant 0 : i32
    %c0_i32_0 = arith.constant 0 : i32
    %c0_i32_1 = arith.constant 0 : i32
    %c0_i32_2 = arith.constant 0 : i32
    return %arg0, %c0_i32, %c0_i32_0, %c0_i32_1 : i32, i32, i32, i32
  }
  func.func @transform_1(%arg0: i32) -> (i32, i32, i32) {
    %c0_i32 = arith.constant 0 : i32
    %c0_i32_0 = arith.constant 0 : i32
    %c0_i32_1 = arith.constant 0 : i32
    return %arg0, %c0_i32, %c0_i32_0 : i32, i32, i32
  }
  func.func @transform_2(%arg0: i32) -> (i32, i32) {
    %c0_i32 = arith.constant 0 : i32
    %c0_i32_0 = arith.constant 0 : i32
    %c0_i32_1 = arith.constant 0 : i32
    return %c0_i32, %c0_i32_0 : i32, i32
  }
  func.func @transform_3(%arg0: i32) -> (i32, i32) {
    %c0_i32 = arith.constant 0 : i32
    %c0_i32_0 = arith.constant 0 : i32
    %c0_i32_1 = arith.constant 0 : i32
    return %c0_i32, %c0_i32_0 : i32, i32
  }
  func.func @transform_4(%arg0: i32) -> (i32, i32) {
    %c0_i32 = arith.constant 0 : i32
    %c0_i32_0 = arith.constant 0 : i32
    %c0_i32_1 = arith.constant 0 : i32
    return %c0_i32, %c0_i32_0 : i32, i32
  }
  func.func @transform_5(%arg0: i32) -> (i32, i32) {
    %c0_i32 = arith.constant 0 : i32
    %c0_i32_0 = arith.constant 0 : i32
    %c0_i32_1 = arith.constant 0 : i32
    return %c0_i32, %c0_i32_0 : i32, i32
  }
  func.func @transform_6(%arg0: i32) -> (i32, i32) {
    %c0_i32 = arith.constant 0 : i32
    %c0_i32_0 = arith.constant 0 : i32
    %c0_i32_1 = arith.constant 0 : i32
    return %c0_i32, %c0_i32_0 : i32, i32
  }
  func.func @transform_7(%arg0: i32) -> (i32, i32) {
    %c0_i32 = arith.constant 0 : i32
    %c0_i32_0 = arith.constant 0 : i32
    %c0_i32_1 = arith.constant 0 : i32
    return %c0_i32, %c0_i32_0 : i32, i32
  }
  func.func @transform_8(%arg0: i32) -> (i32, i32) {
    %c0_i32 = arith.constant 0 : i32
    %c0_i32_0 = arith.constant 0 : i32
    %c0_i32_1 = arith.constant 0 : i32
    return %c0_i32, %c0_i32_0 : i32, i32
  }
  func.func @transform_9(%arg0: i32) -> (i32, i32) {
    %c0_i32 = arith.constant 0 : i32
    %c0_i32_0 = arith.constant 0 : i32
    %c0_i32_1 = arith.constant 0 : i32
    return %c0_i32, %c0_i32_0 : i32, i32
  }
  func.func @transform_10(%arg0: i32) -> (i32, i32, i32) {
    %c0_i32 = arith.constant 0 : i32
    %c0_i32_0 = arith.constant 0 : i32
    %c0_i32_1 = arith.constant 0 : i32
    return %arg0, %c0_i32, %c0_i32_0 : i32, i32, i32
  }
}

module attributes {stable_mosaic.version = 11 : i64} {
  func.func @head_kernel(%arg0: i32, %arg1: memref<1x64x128xbf16, #tpu.memory_space<vmem>>, %arg2: memref<128x128xbf16, #tpu.memory_space<vmem>>, %arg3: memref<1x128xf32, #tpu.memory_space<vmem>>, %arg4: memref<128x128xbf16, #tpu.memory_space<vmem>>, %arg5: memref<1x128xf32, #tpu.memory_space<vmem>>, %arg6: memref<1x1x128xf32, #tpu.memory_space<vmem>>) attributes {dimension_semantics = [#tpu.dimension_semantics<parallel>], iteration_bounds = array<i64: 2>, scalar_prefetch = 0 : i64, scratch_operands = 0 : i64, tpu.core_type = #tpu.core_type<tc>, window_params = [{transform_indices = @transform_0, window_bounds = array<i64: 1, 64, 128>}, {pipeline_mode = #tpu.pipeline_mode<synchronous>, transform_indices = @transform_1, window_bounds = array<i64: 128, 128>}, {pipeline_mode = #tpu.pipeline_mode<synchronous>, transform_indices = @transform_2, window_bounds = array<i64: 1, 128>}, {pipeline_mode = #tpu.pipeline_mode<synchronous>, transform_indices = @transform_3, window_bounds = array<i64: 128, 128>}, {pipeline_mode = #tpu.pipeline_mode<synchronous>, transform_indices = @transform_4, window_bounds = array<i64: 1, 128>}, {transform_indices = @transform_5, window_bounds = array<i64: 1, 1, 128>}]} {
    %c0 = arith.constant 0 : index
    %c0_0 = arith.constant 0 : index
    %c0_1 = arith.constant 0 : index
    %0 = vector.load %arg1[%c0, %c0_0, %c0_1] : memref<1x64x128xbf16, #tpu.memory_space<vmem>>, vector<1x64x128xbf16>
    %1 = vector.shape_cast %0 : vector<1x64x128xbf16> to vector<64x128xbf16>
    %c0_2 = arith.constant 0 : index
    %c0_3 = arith.constant 0 : index
    %2 = vector.load %arg2[%c0_2, %c0_3] : memref<128x128xbf16, #tpu.memory_space<vmem>>, vector<128x128xbf16>
    %cst = arith.constant dense<0.000000e+00> : vector<64x128xf32>
    %3 = tpu.matmul %1, %2, %cst {dimension_numbers = #tpu.dot_dimension_numbers<[1], [0], [0], [1], [0, 0, 1, 1], [], []>} : vector<64x128xbf16>, vector<128x128xbf16>, vector<64x128xf32> -> vector<64x128xf32>
    %c0_4 = arith.constant 0 : index
    %c0_5 = arith.constant 0 : index
    %4 = vector.load %arg3[%c0_4, %c0_5] : memref<1x128xf32, #tpu.memory_space<vmem>>, vector<1x128xf32>
    %5 = vector.broadcast %4 : vector<1x128xf32> to vector<64x128xf32>
    %6 = arith.addf %3, %5 : vector<64x128xf32>
    %7 = arith.negf %6 : vector<64x128xf32>
    %8 = math.exp %7 : vector<64x128xf32>
    %cst_6 = arith.constant 1.000000e+00 : f32
    %9 = vector.broadcast %cst_6 : f32 to vector<64x128xf32>
    %10 = arith.addf %9, %8 : vector<64x128xf32>
    %11 = arith.divf %9, %10 : vector<64x128xf32>
    %12 = arith.mulf %6, %11 : vector<64x128xf32>
    %cst_7 = arith.constant dense<0.000000e+00> : vector<128xf32>
    %13 = vector.multi_reduction <add>, %12, %cst_7 [0] : vector<64x128xf32> to vector<128xf32>
    %14 = vector.shape_cast %13 : vector<128xf32> to vector<1x128xf32>
    %cst_8 = arith.constant 6.400000e+01 : f32
    %15 = vector.broadcast %cst_8 : f32 to vector<1x128xf32>
    %16 = arith.divf %14, %15 : vector<1x128xf32>
    %17 = arith.truncf %16 : vector<1x128xf32> to vector<1x128xbf16>
    %c0_9 = arith.constant 0 : index
    %c0_10 = arith.constant 0 : index
    %18 = vector.load %arg4[%c0_9, %c0_10] : memref<128x128xbf16, #tpu.memory_space<vmem>>, vector<128x128xbf16>
    %cst_11 = arith.constant dense<0.000000e+00> : vector<1x128xf32>
    %19 = tpu.matmul %17, %18, %cst_11 {dimension_numbers = #tpu.dot_dimension_numbers<[1], [0], [0], [1], [0, 0, 1, 1], [], []>} : vector<1x128xbf16>, vector<128x128xbf16>, vector<1x128xf32> -> vector<1x128xf32>
    %c0_12 = arith.constant 0 : index
    %c0_13 = arith.constant 0 : index
    %20 = vector.load %arg5[%c0_12, %c0_13] : memref<1x128xf32, #tpu.memory_space<vmem>>, vector<1x128xf32>
    %21 = arith.addf %19, %20 : vector<1x128xf32>
    %c0_14 = arith.constant 0 : index
    %c0_15 = arith.constant 0 : index
    %c0_16 = arith.constant 0 : index
    %22 = vector.load %arg6[%c0_14, %c0_15, %c0_16] : memref<1x1x128xf32, #tpu.memory_space<vmem>>, vector<1x1x128xf32>
    %23 = vector.shape_cast %22 : vector<1x1x128xf32> to vector<1x128xf32>
    %24 = vector.shape_cast %21 : vector<1x128xf32> to vector<1x1x128xf32>
    tpu.vector_store %arg6[%c0_14, %c0_15, %c0_16], %24 {strides = array<i32>} : memref<1x1x128xf32, #tpu.memory_space<vmem>>, vector<1x1x128xf32>,
    return
  }
  func.func @transform_0(%arg0: i32) -> (i32, i32, i32) {
    %c0_i32 = arith.constant 0 : i32
    %c0_i32_0 = arith.constant 0 : i32
    %c0_i32_1 = arith.constant 0 : i32
    return %arg0, %c0_i32, %c0_i32_0 : i32, i32, i32
  }
  func.func @transform_1(%arg0: i32) -> (i32, i32) {
    %c0_i32 = arith.constant 0 : i32
    %c0_i32_0 = arith.constant 0 : i32
    %c0_i32_1 = arith.constant 0 : i32
    return %c0_i32, %c0_i32_0 : i32, i32
  }
  func.func @transform_2(%arg0: i32) -> (i32, i32) {
    %c0_i32 = arith.constant 0 : i32
    %c0_i32_0 = arith.constant 0 : i32
    %c0_i32_1 = arith.constant 0 : i32
    return %c0_i32, %c0_i32_0 : i32, i32
  }
  func.func @transform_3(%arg0: i32) -> (i32, i32) {
    %c0_i32 = arith.constant 0 : i32
    %c0_i32_0 = arith.constant 0 : i32
    %c0_i32_1 = arith.constant 0 : i32
    return %c0_i32, %c0_i32_0 : i32, i32
  }
  func.func @transform_4(%arg0: i32) -> (i32, i32) {
    %c0_i32 = arith.constant 0 : i32
    %c0_i32_0 = arith.constant 0 : i32
    %c0_i32_1 = arith.constant 0 : i32
    return %c0_i32, %c0_i32_0 : i32, i32
  }
  func.func @transform_5(%arg0: i32) -> (i32, i32, i32) {
    %c0_i32 = arith.constant 0 : i32
    %c0_i32_0 = arith.constant 0 : i32
    %c0_i32_1 = arith.constant 0 : i32
    return %arg0, %c0_i32, %c0_i32_0 : i32, i32, i32
  }
}

</mosaic_0001>

<llo_original>
// kernel: enetv2_forward.5
$region0: #{enetv2_forward.5}
  #allocation0 [shape = 'u32[]', space=smem, size = 0x4, offset = 0x4, fixed_abs, tag = 'smem constant byte address 0x4 - core index']
  #allocation1 [shape = 'u32[144,128]{1,0:T(1,128)}', space=vmem, size = 0x12000, scoped, tag = 'internal scratch']
  %s0 = inlined_call_operand.vmem [shape: bf16[2,64,128], index: 0, kind: input, shape index: {}]
  %s1 = inlined_call_operand.vmem [shape: bf16[128,128], index: 1, kind: input, shape index: {}]
  %s2 = inlined_call_operand.vmem [shape: f32[1,128], index: 2, kind: input, shape index: {}]
  %s3 = inlined_call_operand.vmem [shape: bf16[128,128], index: 3, kind: input, shape index: {}]
  %s4 = inlined_call_operand.vmem [shape: f32[1,128], index: 4, kind: input, shape index: {}]
  %s5 = inlined_call_operand.hbm [shape: f32[2,1,128], index: 5, kind: output, shape index: {}]
  %s6 = sld [smem:[#allocation0]]
  $region53: #{enetv2_forward.5} parent=0
    _
  %s8 = ssub.s32 1, %s6
  %s9 = scalar_select 0, %s8, %s6
  $region1: #{enetv2_forward.5} parent=0
    #allocation2 [shape = 'u8[1024]{0}', space=vmem, size = 0x400, scoped, tag = 'output window, operand 0']
    #allocation3 [shape = 's32[2]{0}', space=sflag, size = 0x8, scoped, tag = 'scoped memory for enetv2_forward.5']
    %10 = vsyncpa [#allocation3], 0
    %s11 = scalar_lea.sflag [#allocation3], 1
    %12 = vsyncpa %s11, 0
    loop: start=0, step=1, limit=4
    $region2: #{enetv2_forward.5} parent=1 // loop_pre_header
      _
    $region3: #{enetv2_forward.5} parent=1 // loop_header
      %s14 = sphi 0, %s18
      %p15 = scmp.ge.s32.totalorder %s14, 4
      %s24 = sphi 0, %s26
      %s27 = sphi 0, %s24
      %s28 = sphi 0, %s27
      %s44 = sphi 0, %s28
      %s48 = sphi 0, %s48
      %s50 = sphi 0, %s48
      %s51 = sphi 0, %s50
      %s65 = sphi 0, %s51
      %s69 = sphi 0, %s69
      %s71 = sphi 0, %s69
      %s72 = sphi 0, %s71
      %s86 = sphi 0, %s72
      %s90 = sphi 0, %s90
      %s92 = sphi 0, %s90
      %s93 = sphi 0, %s92
      %s107 = sphi 0, %s93
      %s111 = sphi 0, %s111
      %s113 = sphi 0, %s111
      %s114 = sphi 0, %s113
      %s128 = sphi 0, %s114
      %s134 = sphi 0, %s136
      %s137 = sphi 0, %s134
      %s138 = sphi 0, %s137
      %s154 = sphi 0, %s138
    $region4: #{enetv2_forward.5} parent=1 // loop_header_branch
      %17 = sbr.rel (%p15) target = $region8
    $region5: #{enetv2_forward.5} parent=1 // loop_body
      %s19 = ssub.s32 %s14, 1
      %s20 = ssub.s32 %s14, 2
      %s21 = sadd.s32 %s14, 1
      %s22 = ssub.s32 %s14, %s21
      %p23 = scmp.eq.s32.totalorder %s22, 0
      %s25 = sadd.s32 %s24, 1
      %s26 = scalar_select %p23, %s24, %s25
      %p29 = pneg %p23
      %p30 = scmp.eq.s32.totalorder %s14, 1
      %p31 = por %p29, %p30
      %p32 = scmp.ne.s32.totalorder %s24, %s27
      %p33 = scmp.eq.s32.totalorder %s14, 0
      %p34 = por %p32, %p33
      %p35 = scmp.ne.s32.totalorder %s24, %s27
      %p36 = scmp.eq.s32.totalorder %s19, 1
      %p37 = por %p35, %p36
      %p38 = scmp.ne.s32.totalorder %s27, %s28
      %p39 = scmp.eq.s32.totalorder %s19, 0
      %p40 = por %p38, %p39
      %p41 = scmp.ne.s32.totalorder %s27, %s28
      %p42 = scmp.eq.s32.totalorder %s20, 1
      %p43 = por %p41, %p42
      %p45 = scmp.ne.s32.totalorder %s28, %s44
      %p46 = scmp.eq.s32.totalorder %s20, 0
      %p47 = por %p45, %p46
      %s49 = sadd.s32 %s48, 1
      %p52 = scmp.eq.s32.totalorder %s14, 1
      %p53 = scmp.ne.s32.totalorder %s48, %s50
      %p54 = scmp.eq.s32.totalorder %s14, 0
      %p55 = por %p53, %p54
      %p56 = scmp.ne.s32.totalorder %s48, %s50
      %p57 = scmp.eq.s32.totalorder %s19, 1
      %p58 = por %p56, %p57
      %p59 = scmp.ne.s32.totalorder %s50, %s51
      %p60 = scmp.eq.s32.totalorder %s19, 0
      %p61 = por %p59, %p60
      %p62 = scmp.ne.s32.totalorder %s50, %s51
      %p63 = scmp.eq.s32.totalorder %s20, 1
      %p64 = por %p62, %p63
      %p66 = scmp.ne.s32.totalorder %s51, %s65
      %p67 = scmp.eq.s32.totalorder %s20, 0
      %p68 = por %p66, %p67
      %s70 = sadd.s32 %s69, 1
      %p73 = scmp.eq.s32.totalorder %s14, 1
      %p74 = scmp.ne.s32.totalorder %s69, %s71
      %p75 = scmp.eq.s32.totalorder %s14, 0
      %p76 = por %p74, %p75
      %p77 = scmp.ne.s32.totalorder %s69, %s71
      %p78 = scmp.eq.s32.totalorder %s19, 1
      %p79 = por %p77, %p78
      %p80 = scmp.ne.s32.totalorder %s71, %s72
      %p81 = scmp.eq.s32.totalorder %s19, 0
      %p82 = por %p80, %p81
      %p83 = scmp.ne.s32.totalorder %s71, %s72
      %p84 = scmp.eq.s32.totalorder %s20, 1
      %p85 = por %p83, %p84
      %p87 = scmp.ne.s32.totalorder %s72, %s86
      %p88 = scmp.eq.s32.totalorder %s20, 0
      %p89 = por %p87, %p88
      %s91 = sadd.s32 %s90, 1
      %p94 = scmp.eq.s32.totalorder %s14, 1
      %p95 = scmp.ne.s32.totalorder %s90, %s92
      %p96 = scmp.eq.s32.totalorder %s14, 0
      %p97 = por %p95, %p96
      %p98 = scmp.ne.s32.totalorder %s90, %s92
      %p99 = scmp.eq.s32.totalorder %s19, 1
      %p100 = por %p98, %p99
      %p101 = scmp.ne.s32.totalorder %s92, %s93
      %p102 = scmp.eq.s32.totalorder %s19, 0
      %p103 = por %p101, %p102
      %p104 = scmp.ne.s32.totalorder %s92, %s93
      %p105 = scmp.eq.s32.totalorder %s20, 1
      %p106 = por %p104, %p105
      %p108 = scmp.ne.s32.totalorder %s93, %s107
      %p109 = scmp.eq.s32.totalorder %s20, 0
      %p110 = por %p108, %p109
      %s112 = sadd.s32 %s111, 1
      %p115 = scmp.eq.s32.totalorder %s14, 1
      %p116 = scmp.ne.s32.totalorder %s111, %s113
      %p117 = scmp.eq.s32.totalorder %s14, 0
      %p118 = por %p116, %p117
      %p119 = scmp.ne.s32.totalorder %s111, %s113
      %p120 = scmp.eq.s32.totalorder %s19, 1
      %p121 = por %p119, %p120
      %p122 = scmp.ne.s32.totalorder %s113, %s114
      %p123 = scmp.eq.s32.totalorder %s19, 0
      %p124 = por %p122, %p123
      %p125 = scmp.ne.s32.totalorder %s113, %s114
      %p126 = scmp.eq.s32.totalorder %s20, 1
      %p127 = por %p125, %p126
      %p129 = scmp.ne.s32.totalorder %s114, %s128
      %p130 = scmp.eq.s32.totalorder %s20, 0
      %p131 = por %p129, %p130
      %s132 = ssub.s32 %s14, %s21
      %p133 = scmp.eq.s32.totalorder %s132, 0
      %s135 = sadd.s32 %s134, 1
      %s136 = scalar_select %p133, %s134, %s135
      %p139 = pneg %p133
      %p140 = scmp.eq.s32.totalorder %s14, 1
      %p141 = por %p139, %p140
      %p142 = scmp.ne.s32.totalorder %s134, %s137
      %p143 = scmp.eq.s32.totalorder %s14, 0
      %p144 = por %p142, %p143
      %p145 = scmp.ne.s32.totalorder %s134, %s137
      %p146 = scmp.eq.s32.totalorder %s19, 1
      %p147 = por %p145, %p146
      %p148 = scmp.ne.s32.totalorder %s137, %s138
      %p149 = scmp.eq.s32.totalorder %s19, 0
      %p150 = por %p148, %p149
      %p151 = scmp.ne.s32.totalorder %s137, %s138
      %p152 = scmp.eq.s32.totalorder %s20, 1
      %p153 = por %p151, %p152
      %p155 = scmp.ne.s32.totalorder %s138, %s154
      %p156 = scmp.eq.s32.totalorder %s20, 0
      %p157 = por %p155, %p156
      %p158 = scmp.le.s32.totalorder 1, %s14
      %p159 = scmp.lt.s32.totalorder %s14, 3
      %p160 = pnand %p158, %p159
      %p161 = pneg %p160
      // Predicated region
      $region9: #{enetv2_forward.5} parent=5 // pred_check
        _
      $region10: #{enetv2_forward.5} parent=5 // pred_check_branch
        %163 = sbr.rel (%p160) target = $region12
      $region11: #{enetv2_forward.5} parent=5 // pred_region
        %s164 = ssub.s32 %s14, 1
        // Predicated region
        $region13: #{enetv2_forward.5} parent=11 // pred_check
          %p165 = pneg %p61
        $region14: #{enetv2_forward.5} parent=11 // pred_check_branch
          %167 = sbr.rel (%p165) target = $region16
        $region15: #{enetv2_forward.5} parent=11 // pred_region
          _
        $region16: #{enetv2_forward.5} parent=11 // pred_fallthru
          _
        // Predicated region
        $region17: #{enetv2_forward.5} parent=11 // pred_check
          %p168 = pneg %p82
        $region18: #{enetv2_forward.5} parent=11 // pred_check_branch
          %170 = sbr.rel (%p168) target = $region20
        $region19: #{enetv2_forward.5} parent=11 // pred_region
          _
        $region20: #{enetv2_forward.5} parent=11 // pred_fallthru
          _
        // Predicated region
        $region21: #{enetv2_forward.5} parent=11 // pred_check
          %p171 = pneg %p103
        $region22: #{enetv2_forward.5} parent=11 // pred_check_branch
          %173 = sbr.rel (%p171) target = $region24
        $region23: #{enetv2_forward.5} parent=11 // pred_region
          _
        $region24: #{enetv2_forward.5} parent=11 // pred_fallthru
          _
        // Predicated region
        $region25: #{enetv2_forward.5} parent=11 // pred_check
          %p174 = pneg %p124
        $region26: #{enetv2_forward.5} parent=11 // pred_check_branch
          %176 = sbr.rel (%p174) target = $region28
        $region27: #{enetv2_forward.5} parent=11 // pred_region
          _
        $region28: #{enetv2_forward.5} parent=11 // pred_fallthru
          _
      $region12: #{enetv2_forward.5} parent=5 // pred_fallthru
        _
      %p177 = scmp.lt.s32.totalorder %s14, 2
      // Predicated region
      $region29: #{enetv2_forward.5} parent=5 // pred_check
        %p178 = pneg %p177
      $region30: #{enetv2_forward.5} parent=5 // pred_check_branch
        %180 = sbr.rel (%p178) target = $region32
      $region31: #{enetv2_forward.5} parent=5 // pred_region
        // Predicated region
        $region33: #{enetv2_forward.5} parent=31 // pred_check
          %p181 = pneg %p34
        $region34: #{enetv2_forward.5} parent=31 // pred_check_branch
          %183 = sbr.rel (%p181) target = $region36
        $region35: #{enetv2_forward.5} parent=31 // pred_region
          %p184 = scmp.lt.s32.totalorder %s14, 1
          %s185 = scalar_select %p184, %s14, 1
          %s186 = smul.addr %s185, 8
          %s187 = smul.addr %s186, 4
          %s188 = scalar_lea.vmem %s0, %s187
        $region36: #{enetv2_forward.5} parent=31 // pred_fallthru
          _
      $region32: #{enetv2_forward.5} parent=5 // pred_fallthru
        _
      %p189 = scmp.le.s32.totalorder 1, %s14
      %p190 = scmp.lt.s32.totalorder %s14, 3
      %p191 = pnand %p189, %p190
      %p192 = pneg %p191
      // Predicated region
      $region37: #{enetv2_forward.5} parent=5 // pred_check
        _
      $region38: #{enetv2_forward.5} parent=5 // pred_check_branch
        %194 = sbr.rel (%p191) target = $region40
      $region39: #{enetv2_forward.5} parent=5 // pred_region
        %s195 = ssub.s32 %s14, 1
        %p196 = scmp.lt.s32.totalorder %s19, 1
        %s197 = scalar_select %p196, %s19, 1
        %s198 = smul.addr %s197, 8
        %s199 = smul.addr %s198, 4
        %s200 = scalar_lea.vmem %s0, %s199
        %p201 = pneg %p40
        %p202 = pneg %p37
        %p203 = pneg %p61
        %p204 = pneg %p58
        %p205 = pneg %p82
        %p206 = pneg %p79
        %p207 = pneg %p103
        %p208 = pneg %p100
        %p209 = pneg %p124
        %p210 = pneg %p121
        %p211 = pneg %p150
        %p212 = pneg %p147
        %s213 = sand.u32 %s137, 1
        %s214 = scalar_lea.sflag [#allocation3], %s213
        %s215 = sand.u32 %s137, 1
        %s216 = scalar_lea.vmem [#allocation2], %s215
        %p217 = scmp.lt.s32.totalorder %s19, 1
        %s218 = scalar_select %p217, %s19, 1
        %s219 = smul.addr %s218, 8
        %s220 = smul.addr %s219, 4
        %s221 = scalar_lea.vmem %s0, %s220
        %v223 = vld [vmem:[%s221] sm:$0xf]
        %v224 = vld [vmem:[%s221 + $0x4] sm:$0xf]
        %v225 = vld [vmem:[%s221 + $0x8] sm:$0xf]
        %v226 = vld [vmem:[%s221 + $0xc] sm:$0xf]
        %v227 = vld [vmem:[%s221 + $0x10] sm:$0xf]
        %v228 = vld [vmem:[%s221 + $0x14] sm:$0xf]
        %v229 = vld [vmem:[%s221 + $0x18] sm:$0xf]
        %v230 = vld [vmem:[%s221 + $0x1c] sm:$0xf]
        %v231 = vld [vmem:[%s1] sm:$0xf]
        %v232 = vld [vmem:[%s1 + $0x4] sm:$0xf]
        %v233 = vld [vmem:[%s1 + $0x8] sm:$0xf]
        %v234 = vld [vmem:[%s1 + $0xc] sm:$0xf]
        %v235 = vld [vmem:[%s1 + $0x10] sm:$0xf]
        %v236 = vld [vmem:[%s1 + $0x14] sm:$0xf]
        %v237 = vld [vmem:[%s1 + $0x18] sm:$0xf]
        %v238 = vld [vmem:[%s1 + $0x1c] sm:$0xf]
        %v239 = vld [vmem:[%s1 + $0x20] sm:$0xf]
        %v240 = vld [vmem:[%s1 + $0x24] sm:$0xf]
        %v241 = vld [vmem:[%s1 + $0x28] sm:$0xf]
        %v242 = vld [vmem:[%s1 + $0x2c] sm:$0xf]
        %v243 = vld [vmem:[%s1 + $0x30] sm:$0xf]
        %v244 = vld [vmem:[%s1 + $0x34] sm:$0xf]
        %v245 = vld [vmem:[%s1 + $0x38] sm:$0xf]
        %v246 = vld [vmem:[%s1 + $0x3c] sm:$0xf]
        %v247 = vld [vmem:[%s2] sm:$0x1]
        %v249 = vlaneseq
        %v250 = vshrl.u32 %v249, 7
        %v251 = vsub.s32 0, %v250
        %v252 = vrot.slane %v247, %v251
        %v262 = vunpack.c.l.b16 %v223
        %v263 = vunpack.c.l.b16 %v224
        %v264 = vunpack.c.l.b16 %v225
        %v265 = vunpack.c.l.b16 %v226
        %v266 = vunpack.c.l.b16 %v227
        %v267 = vunpack.c.l.b16 %v228
        %v268 = vunpack.c.l.b16 %v229
        %v269 = vunpack.c.l.b16 %v230
        %v270 = vpack.c.b16 %v263, %v262
        %v271 = vpack.c.b16 %v265, %v264
        %v272 = vpack.c.b16 %v267, %v266
        %v273 = vpack.c.b16 %v269, %v268
        %v294 = vunpack.c.l.b16 %v231
        %v295 = vunpack.c.l.b16 %v232
        %v296 = vunpack.c.l.b16 %v233
        %v297 = vunpack.c.l.b16 %v234
        %v298 = vunpack.c.l.b16 %v235
        %v299 = vunpack.c.l.b16 %v236
        %v300 = vunpack.c.l.b16 %v237
        %v301 = vunpack.c.l.b16 %v238
        %v302 = vunpack.c.l.b16 %v239
        %v303 = vunpack.c.l.b16 %v240
        %v304 = vunpack.c.l.b16 %v241
        %v305 = vunpack.c.l.b16 %v242
        %v306 = vunpack.c.l.b16 %v243
        %v307 = vunpack.c.l.b16 %v244
        %v308 = vunpack.c.l.b16 %v245
        %v309 = vunpack.c.l.b16 %v246
        %v310 = vpack.c.b16 %v295, %v294
        %v311 = vpack.c.b16 %v297, %v296
        %v312 = vpack.c.b16 %v299, %v298
        %v313 = vpack.c.b16 %v301, %v300
        %v314 = vpack.c.b16 %v303, %v302
        %v315 = vpack.c.b16 %v305, %v304
        %v316 = vpack.c.b16 %v307, %v306
        %v317 = vpack.c.b16 %v309, %v308
        %326 = vmatprep.subr.bf16.mxu0 0
        %327 = vmatpush1.bf16.msra.mxu0 %v310
        %328 = vmatprep.subr.bf16.mxu0 0
        %329 = vmatpush1.bf16.msra.mxu0 %v311
        %330 = vmatprep.subr.bf16.mxu0 0
        %331 = vmatpush1.bf16.msra.mxu0 %v312
        %332 = vmatprep.subr.bf16.mxu0 0
        %333 = vmatpush1.bf16.msra.mxu0 %v313
        %334 = vmatprep.subr.bf16.mxu0 0
        %335 = vmatpush1.bf16.msra.mxu0 %v314
        %336 = vmatprep.subr.bf16.mxu0 0
        %337 = vmatpush1.bf16.msra.mxu0 %v315
        %338 = vmatprep.subr.bf16.mxu0 0
        %339 = vmatpush1.bf16.msra.mxu0 %v316
        %340 = vmatprep.subr.bf16.mxu0 0
        %341 = vmatpush1.bf16.msra.mxu0 %v317
        %342 = vmatprep.subr.bf16.mxu0 0
        %343 = vmatpush1.bf16.msra.mxu0 0
        %344 = vmatprep.subr.bf16.mxu0 0
        %345 = vmatpush1.bf16.msra.mxu0 0
        %346 = vmatprep.subr.bf16.mxu0 0
        %347 = vmatpush1.bf16.msra.mxu0 0
        %348 = vmatprep.subr.bf16.mxu0 0
        %349 = vmatpush1.bf16.msra.mxu0 0
        %350 = vmatprep.subr.bf16.mxu0 0
        %351 = vmatpush1.bf16.msra.mxu0 0
        %352 = vmatprep.subr.bf16.mxu0 0
        %353 = vmatpush1.bf16.msra.mxu0 0
        %354 = vmatprep.subr.bf16.mxu0 0
        %355 = vmatpush1.bf16.msra.mxu0 0
        %356 = vmatprep.subr.bf16.mxu0 0
        %357 = vmatpush1.bf16.msra.mxu0 0
        %358 = vmatprep.mubr.bf16.mxu0 0
        %359 = vmatmul.mubr.bf16.gmra.mrb[0].mxu0 %v270
        %v360 = vpop.f32.mrb[0].mxu0
        %v361 = vadd.f32 %v252, %v360
        %v362 = vpop.f32.mrb[0].mxu0
        %v363 = vpop.f32.mrb[0].mxu0
        %v364 = vadd.f32 %v252, %v363
        %v365 = vpop.f32.mrb[0].mxu0
        %366 = vmatprep.mubr.bf16.mxu0 0
        %367 = vmatmul.mubr.bf16.gmra.mrb[0].mxu0 %v271
        %v368 = vpop.f32.mrb[0].mxu0
        %v369 = vadd.f32 %v252, %v368
        %v370 = vpop.f32.mrb[0].mxu0
        %v371 = vpop.f32.mrb[0].mxu0
        %v372 = vadd.f32 %v252, %v371
        %v373 = vpop.f32.mrb[0].mxu0
        %374 = vmatprep.mubr.bf16.mxu0 0
        %375 = vmatmul.mubr.bf16.gmra.mrb[0].mxu0 %v272
        %v376 = vpop.f32.mrb[0].mxu0
        %v377 = vadd.f32 %v252, %v376
        %v378 = vpop.f32.mrb[0].mxu0
        %v379 = vpop.f32.mrb[0].mxu0
        %v380 = vadd.f32 %v252, %v379
        %v381 = vpop.f32.mrb[0].mxu0
        %382 = vmatprep.mubr.bf16.mxu0 0
        %383 = vmatmul.mubr.bf16.gmra.mrb[0].mxu0 %v273
        %v384 = vpop.f32.mrb[0].mxu0
        %v385 = vadd.f32 %v252, %v384
        %v386 = vpop.f32.mrb[0].mxu0
        %v387 = vpop.f32.mrb[0].mxu0
        %v388 = vadd.f32 %v252, %v387
        %v389 = vpop.f32.mrb[0].mxu0
        %390 = vdwg.mxu0
        %v391 = vxor.u32 %v361, 2147483648
        %v392 = vxor.u32 %v364, 2147483648
        %v393 = vxor.u32 %v369, 2147483648
        %v394 = vxor.u32 %v372, 2147483648
        %v395 = vxor.u32 %v377, 2147483648
        %v396 = vxor.u32 %v380, 2147483648
        %v397 = vxor.u32 %v385, 2147483648
        %v398 = vxor.u32 %v388, 2147483648
        %v399 = vmul.f32 %v391, 1.442695
        %v400 = vpow.pop %v399
        %v401 = vmul.f32 %v392, 1.442695
        %v402 = vpow.pop %v401
        %v403 = vmul.f32 %v393, 1.442695
        %v404 = vpow.pop %v403
        %v405 = vmul.f32 %v394, 1.442695
        %v406 = vpow.pop %v405
        %v407 = vmul.f32 %v395, 1.442695
        %v408 = vpow.pop %v407
        %v409 = vmul.f32 %v396, 1.442695
        %v410 = vpow.pop %v409
        %v411 = vmul.f32 %v397, 1.442695
        %v412 = vpow.pop %v411
        %v413 = vmul.f32 %v398, 1.442695
        %v414 = vpow.pop %v413
        %v415 = vadd.f32 %v400, 1.0
        %v416 = vadd.f32 %v402, 1.0
        %v417 = vadd.f32 %v404, 1.0
        %v418 = vadd.f32 %v406, 1.0
        %v419 = vadd.f32 %v408, 1.0
        %v420 = vadd.f32 %v410, 1.0
        %v421 = vadd.f32 %v412, 1.0
        %v422 = vadd.f32 %v414, 1.0
        %v423 = vrcp.pop %v415
        %v424 = vmul.f32 1.0, %v423
        %v425 = vrcp.pop %v416
        %v426 = vmul.f32 1.0, %v425
        %v427 = vrcp.pop %v417
        %v428 = vmul.f32 1.0, %v427
        %v429 = vrcp.pop %v418
        %v430 = vmul.f32 1.0, %v429
        %v431 = vrcp.pop %v419
        %v432 = vmul.f32 1.0, %v431
        %v433 = vrcp.pop %v420
        %v434 = vmul.f32 1.0, %v433
        %v435 = vrcp.pop %v421
        %v436 = vmul.f32 1.0, %v435
        %v437 = vrcp.pop %v422
        %v438 = vmul.f32 1.0, %v437
        %v439 = vmul.f32 %v361, %v424
        %v440 = vmul.f32 %v364, %v426
        %v441 = vmul.f32 %v369, %v428
        %v442 = vmul.f32 %v372, %v430
        %v443 = vmul.f32 %v377, %v432
        %v444 = vmul.f32 %v380, %v434
        %v445 = vmul.f32 %v385, %v436
        %v446 = vmul.f32 %v388, %v438
        %v447 = vadd.f32 %v439, %v440
        %v448 = vadd.f32 %v447, %v441
        %v449 = vadd.f32 %v448, %v442
        %v450 = vadd.f32 %v449, %v443
        %v451 = vadd.f32 %v450, %v444
        %v452 = vadd.f32 %v451, %v445
        %v453 = vadd.f32 %v452, %v446
        %v454 = vrot.slane %v453, 4
        %v455 = vadd.f32 %v453, %v454
        %v456 = vrot.slane %v455, 2
        %v457 = vadd.f32 %v455, %v456
        %v458 = vrot.slane %v457, 1
        %v459 = vadd.f32 %v457, %v458
        %v460 = vrcp.pop 64.0
        %v461 = vmul.f32 %v459, %v460
        %v462 = vpack.c.bf16 %v461, %v461
        %v463 = vld [vmem:[%s3] sm:$0xf]
        %v464 = vld [vmem:[%s3 + $0x4] sm:$0xf]
        %v465 = vld [vmem:[%s3 + $0x8] sm:$0xf]
        %v466 = vld [vmem:[%s3 + $0xc] sm:$0xf]
        %v467 = vld [vmem:[%s3 + $0x10] sm:$0xf]
        %v468 = vld [vmem:[%s3 + $0x14] sm:$0xf]
        %v469 = vld [vmem:[%s3 + $0x18] sm:$0xf]
        %v470 = vld [vmem:[%s3 + $0x1c] sm:$0xf]
        %v471 = vld [vmem:[%s3 + $0x20] sm:$0xf]
        %v472 = vld [vmem:[%s3 + $0x24] sm:$0xf]
        %v473 = vld [vmem:[%s3 + $0x28] sm:$0xf]
        %v474 = vld [vmem:[%s3 + $0x2c] sm:$0xf]
        %v475 = vld [vmem:[%s3 + $0x30] sm:$0xf]
        %v476 = vld [vmem:[%s3 + $0x34] sm:$0xf]
        %v477 = vld [vmem:[%s3 + $0x38] sm:$0xf]
        %v478 = vld [vmem:[%s3 + $0x3c] sm:$0xf]
        %v479 = vld [vmem:[%s4] sm:$0x1]
        %v496 = vunpack.c.l.b16 %v463
        %v497 = vunpack.c.l.b16 %v464
        %v498 = vunpack.c.l.b16 %v465
        %v499 = vunpack.c.l.b16 %v466
        %v500 = vunpack.c.l.b16 %v467
        %v501 = vunpack.c.l.b16 %v468
        %v502 = vunpack.c.l.b16 %v469
        %v503 = vunpack.c.l.b16 %v470
        %v504 = vunpack.c.l.b16 %v471
        %v505 = vunpack.c.l.b16 %v472
        %v506 = vunpack.c.l.b16 %v473
        %v507 = vunpack.c.l.b16 %v474
        %v508 = vunpack.c.l.b16 %v475
        %v509 = vunpack.c.l.b16 %v476
        %v510 = vunpack.c.l.b16 %v477
        %v511 = vunpack.c.l.b16 %v478
        %v512 = vpack.c.b16 %v497, %v496
        %v513 = vpack.c.b16 %v499, %v498
        %v514 = vpack.c.b16 %v501, %v500
        %v515 = vpack.c.b16 %v503, %v502
        %v516 = vpack.c.b16 %v505, %v504
        %v517 = vpack.c.b16 %v507, %v506
        %v518 = vpack.c.b16 %v509, %v508
        %v519 = vpack.c.b16 %v511, %v510
        %528 = vmatprep.subr.bf16.mxu0 0
        %529 = vmatpush1.bf16.msra.mxu0 %v512
        %530 = vmatprep.subr.bf16.mxu0 0
        %531 = vmatpush1.bf16.msra.mxu0 %v513
        %532 = vmatprep.subr.bf16.mxu0 0
        %533 = vmatpush1.bf16.msra.mxu0 %v514
        %534 = vmatprep.subr.bf16.mxu0 0
        %535 = vmatpush1.bf16.msra.mxu0 %v515
        %536 = vmatprep.subr.bf16.mxu0 0
        %537 = vmatpush1.bf16.msra.mxu0 %v516
        %538 = vmatprep.subr.bf16.mxu0 0
        %539 = vmatpush1.bf16.msra.mxu0 %v517
        %540 = vmatprep.subr.bf16.mxu0 0
        %541 = vmatpush1.bf16.msra.mxu0 %v518
        %542 = vmatprep.subr.bf16.mxu0 0
        %543 = vmatpush1.bf16.msra.mxu0 %v519
        %544 = vmatprep.subr.bf16.mxu0 0
        %545 = vmatpush1.bf16.msra.mxu0 0
        %546 = vmatprep.subr.bf16.mxu0 0
        %547 = vmatpush1.bf16.msra.mxu0 0
        %548 = vmatprep.subr.bf16.mxu0 0
        %549 = vmatpush1.bf16.msra.mxu0 0
        %550 = vmatprep.subr.bf16.mxu0 0
        %551 = vmatpush1.bf16.msra.mxu0 0
        %552 = vmatprep.subr.bf16.mxu0 0
        %553 = vmatpush1.bf16.msra.mxu0 0
        %554 = vmatprep.subr.bf16.mxu0 0
        %555 = vmatpush1.bf16.msra.mxu0 0
        %556 = vmatprep.subr.bf16.mxu0 0
        %557 = vmatpush1.bf16.msra.mxu0 0
        %558 = vmatprep.subr.bf16.mxu0 0
        %559 = vmatpush1.bf16.msra.mxu0 0
        %560 = vmatprep.mubr.bf16.mxu0 0
        %561 = vmatmul.mubr.bf16.gmra.mrb[0].mxu0 %v462
        %v562 = vpop.f32.mrb[0].mxu0
        %v563 = vadd.f32 %v479, %v562
        %v564 = vpop.f32.mrb[0].mxu0
        %v565 = vpop.f32.mrb[0].mxu0
        %v566 = vpop.f32.mrb[0].mxu0
        %567 = vdwg.mxu0
        %568 = vst [vmem:[%s216] sm:$0x1] %v563
        %s569 = sand.u32 %s137, 1
        %s570 = scalar_lea.sflag [#allocation3], %s569
        %s571 = sand.u32 %s137, 1
        %s572 = scalar_lea.vmem [#allocation2], %s571
        // Predicated region
        $region41: #{enetv2_forward.5} parent=39 // pred_check
          %p573 = pneg %p147
        $region42: #{enetv2_forward.5} parent=39 // pred_check_branch
          %575 = sbr.rel (%p573) target = $region44
        $region43: #{enetv2_forward.5} parent=39 // pred_region
          %s577 = ssub.s32 16, 16
          %578 = vsyncadd %s570, %s577
          %s579 = smul.addr %s19, 16
          %s580 = scalar_lea.hbm %s5, %s579
          %s582 = sshll.u32 %s572, 4
          %s583 = int_to_ptr.vmem [resolvable:$true] %s582
          %585 = dma.vmem_to_hbm [thread:$0]  %s583, 16, %s580, %s570
        $region44: #{enetv2_forward.5} parent=39 // pred_fallthru
          _
      $region40: #{enetv2_forward.5} parent=5 // pred_fallthru
        _
      %p586 = scmp.le.s32.totalorder 2, %s14
      // Predicated region
      $region45: #{enetv2_forward.5} parent=5 // pred_check
        %p587 = pneg %p586
      $region46: #{enetv2_forward.5} parent=5 // pred_check_branch
        %589 = sbr.rel (%p587) target = $region48
      $region47: #{enetv2_forward.5} parent=5 // pred_region
        %s590 = ssub.s32 %s14, 2
        // Predicated region
        $region49: #{enetv2_forward.5} parent=47 // pred_check
          %p591 = pneg %p153
        $region50: #{enetv2_forward.5} parent=47 // pred_check_branch
          %593 = sbr.rel (%p591) target = $region52
        $region51: #{enetv2_forward.5} parent=47 // pred_region
          %s594 = sand.u32 %s138, 1
          %s595 = scalar_lea.sflag [#allocation3], %s594
          %s596 = sand.u32 %s138, 1
          %s597 = scalar_lea.vmem [#allocation2], %s596
          %598 = dma.done %s595, 16
        $region52: #{enetv2_forward.5} parent=47 // pred_fallthru
          _
      $region48: #{enetv2_forward.5} parent=5 // pred_fallthru
        _
    $region6: #{enetv2_forward.5} parent=1 // loop_footer
      %s18 = sadd.s32 1, %s14
    $region7: #{enetv2_forward.5} parent=1 // loop_footer_branch
      %13 = sbr.rel target = $region3
    $region8: #{enetv2_forward.5} parent=1 // loop_exit
      _
    %599 = vsyncpa [#allocation3], 1
    %s600 = scalar_lea.sflag [#allocation3], 1
    %601 = vsyncpa %s600, 1

// kernel: enetv2_forward.3
$region0: #{enetv2_forward.3}
  #allocation0 [shape = 'u32[]', space=smem, size = 0x4, offset = 0x4, fixed_abs, tag = 'smem constant byte address 0x4 - core index']
  #allocation1 [shape = 'u32[144,128]{1,0:T(1,128)}', space=vmem, size = 0x12000, scoped, tag = 'internal scratch']
  %s0 = inlined_call_operand.vmem [shape: bf16[128,27], index: 0, kind: input, shape index: {}]
  %s1 = inlined_call_operand.vmem [shape: bf16[27,128], index: 1, kind: input, shape index: {}]
  %s2 = inlined_call_operand.vmem [shape: f32[1,128], index: 2, kind: input, shape index: {}]
  %s3 = inlined_call_operand.vmem [shape: bf16[128,128], index: 3, kind: input, shape index: {}]
  %s4 = inlined_call_operand.vmem [shape: f32[1,128], index: 4, kind: input, shape index: {}]
  %s5 = inlined_call_operand.vmem [shape: bf16[128,128], index: 5, kind: output, shape index: {0}]
  %s6 = inlined_call_operand.vmem [shape: bf16[128,128], index: 6, kind: output, shape index: {1}]
  %7 = xla_tuple %s5, %s6
  %s8 = sld [smem:[#allocation0]]
  $region38: #{enetv2_forward.3} parent=0
    _
  %s10 = ssub.s32 1, %s8
  %s11 = scalar_select 0, %s10, %s8
  // Predicated region
  $region2: #{enetv2_forward.3} parent=0 // pred_check
    _
  $region3: #{enetv2_forward.3} parent=0 // pred_check_branch
    %13 = sbr.rel (0) target = $region5
  $region4: #{enetv2_forward.3} parent=0 // pred_region
    _
  $region5: #{enetv2_forward.3} parent=0 // pred_fallthru
    _
  // Predicated region
  $region6: #{enetv2_forward.3} parent=0 // pred_check
    _
  $region7: #{enetv2_forward.3} parent=0 // pred_check_branch
    %15 = sbr.rel (0) target = $region9
  $region8: #{enetv2_forward.3} parent=0 // pred_region
    _
  $region9: #{enetv2_forward.3} parent=0 // pred_fallthru
    _
  // Predicated region
  $region10: #{enetv2_forward.3} parent=0 // pred_check
    _
  $region11: #{enetv2_forward.3} parent=0 // pred_check_branch
    %17 = sbr.rel (0) target = $region13
  $region12: #{enetv2_forward.3} parent=0 // pred_region
    _
  $region13: #{enetv2_forward.3} parent=0 // pred_fallthru
    _
  // Predicated region
  $region14: #{enetv2_forward.3} parent=0 // pred_check
    _
  $region15: #{enetv2_forward.3} parent=0 // pred_check_branch
    %19 = sbr.rel (0) target = $region17
  $region16: #{enetv2_forward.3} parent=0 // pred_region
    _
  $region17: #{enetv2_forward.3} parent=0 // pred_fallthru
    _
  // Predicated region
  $region18: #{enetv2_forward.3} parent=0 // pred_check
    _
  $region19: #{enetv2_forward.3} parent=0 // pred_check_branch
    %21 = sbr.rel (0) target = $region21
  $region20: #{enetv2_forward.3} parent=0 // pred_region
    _
  $region21: #{enetv2_forward.3} parent=0 // pred_fallthru
    _
  %v23 = vld [vmem:[%s0] sm:$0xf]
  %v24 = vld [vmem:[%s0 + $0x4] sm:$0xf]
  %v25 = vld [vmem:[%s0 + $0x8] sm:$0xf]
  %v26 = vld [vmem:[%s0 + $0xc] sm:$0xf]
  %v27 = vld [vmem:[%s0 + $0x10] sm:$0xf]
  %v28 = vld [vmem:[%s0 + $0x14] sm:$0xf]
  %v29 = vld [vmem:[%s0 + $0x18] sm:$0xf]
  %v30 = vld [vmem:[%s0 + $0x1c] sm:$0xf]
  %v31 = vld [vmem:[%s0 + $0x20] sm:$0xf]
  %v32 = vld [vmem:[%s0 + $0x24] sm:$0xf]
  %v33 = vld [vmem:[%s0 + $0x28] sm:$0xf]
  %v34 = vld [vmem:[%s0 + $0x2c] sm:$0xf]
  %v35 = vld [vmem:[%s0 + $0x30] sm:$0xf]
  %v36 = vld [vmem:[%s0 + $0x34] sm:$0xf]
  %v37 = vld [vmem:[%s0 + $0x38] sm:$0xf]
  %v38 = vld [vmem:[%s0 + $0x3c] sm:$0xf]
  %v39 = vld [vmem:[%s1] sm:$0xf]
  %v40 = vld [vmem:[%s1 + $0x4] sm:$0xf]
  %v41 = vld [vmem:[%s1 + $0x8] sm:$0xf]
  %v42 = vld [vmem:[%s1 + $0xc] sm:$0x3]
  %v43 = vld [vmem:[%s2] sm:$0x1]
  %v45 = vlaneseq
  %v46 = vshrl.u32 %v45, 7
  %v47 = vsub.s32 0, %v46
  %v48 = vrot.slane %v43, %v47
  %v66 = vunpack.c.l.b16 %v23
  %v67 = vunpack.c.l.b16 %v24
  %v68 = vunpack.c.l.b16 %v25
  %v69 = vunpack.c.l.b16 %v26
  %v70 = vunpack.c.l.b16 %v27
  %v71 = vunpack.c.l.b16 %v28
  %v72 = vunpack.c.l.b16 %v29
  %v73 = vunpack.c.l.b16 %v30
  %v74 = vunpack.c.l.b16 %v31
  %v75 = vunpack.c.l.b16 %v32
  %v76 = vunpack.c.l.b16 %v33
  %v77 = vunpack.c.l.b16 %v34
  %v78 = vunpack.c.l.b16 %v35
  %v79 = vunpack.c.l.b16 %v36
  %v80 = vunpack.c.l.b16 %v37
  %v81 = vunpack.c.l.b16 %v38
  %v82 = vpack.c.b16 %v67, %v66
  %v83 = vpack.c.b16 %v69, %v68
  %v84 = vpack.c.b16 %v71, %v70
  %v85 = vpack.c.b16 %v73, %v72
  %v86 = vpack.c.b16 %v75, %v74
  %v87 = vpack.c.b16 %v77, %v76
  %v88 = vpack.c.b16 %v79, %v78
  %v89 = vpack.c.b16 %v81, %v80
  %v94 = vunpack.c.l.b16 %v39
  %v95 = vunpack.c.l.b16 %v40
  %v96 = vunpack.c.l.b16 %v41
  %v97 = vunpack.c.l.b16 %v42
  %v98 = vpack.c.b16 %v95, %v94
  %v99 = vpack.c.b16 %v97, %v96
  %vm101 = vcmask 220160
  %v103 = vsel %vm101, %v82, 0
  %v106 = vsel %vm101, %v83, 0
  %v109 = vsel %vm101, %v84, 0
  %v112 = vsel %vm101, %v85, 0
  %v115 = vsel %vm101, %v86, 0
  %v118 = vsel %vm101, %v87, 0
  %v121 = vsel %vm101, %v88, 0
  %v124 = vsel %vm101, %v89, 0
  %vm126 = vcmask 1044480
  %vm127 = vcmask 1045504
  %v128 = vsel %vm126, 4294967295, 65535
  %v129 = vsel %vm127, %v128, 0
  %v131 = vand.u32 %v99, %v129
  %133 = vmatprep.subr.bf16.mxu0 0
  %134 = vmatpush1.bf16.msra.mxu0 %v98
  %135 = vmatprep.subr.bf16.mxu0 0
  %136 = vmatpush1.bf16.msra.mxu0 %v131
  %137 = vmatprep.subr.bf16.mxu0 0
  %138 = vmatpush1.bf16.msra.mxu0 0
  %139 = vmatprep.subr.bf16.mxu0 0
  %140 = vmatpush1.bf16.msra.mxu0 0
  %141 = vmatprep.subr.bf16.mxu0 0
  %142 = vmatpush1.bf16.msra.mxu0 0
  %143 = vmatprep.subr.bf16.mxu0 0
  %144 = vmatpush1.bf16.msra.mxu0 0
  %145 = vmatprep.subr.bf16.mxu0 0
  %146 = vmatpush1.bf16.msra.mxu0 0
  %147 = vmatprep.subr.bf16.mxu0 0
  %148 = vmatpush1.bf16.msra.mxu0 0
  %149 = vmatprep.subr.bf16.mxu0 0
  %150 = vmatpush1.bf16.msra.mxu0 0
  %151 = vmatprep.subr.bf16.mxu0 0
  %152 = vmatpush1.bf16.msra.mxu0 0
  %153 = vmatprep.subr.bf16.mxu0 0
  %154 = vmatpush1.bf16.msra.mxu0 0
  %155 = vmatprep.subr.bf16.mxu0 0
  %156 = vmatpush1.bf16.msra.mxu0 0
  %157 = vmatprep.subr.bf16.mxu0 0
  %158 = vmatpush1.bf16.msra.mxu0 0
  %159 = vmatprep.subr.bf16.mxu0 0
  %160 = vmatpush1.bf16.msra.mxu0 0
  %161 = vmatprep.subr.bf16.mxu0 0
  %162 = vmatpush1.bf16.msra.mxu0 0
  %163 = vmatprep.subr.bf16.mxu0 0
  %164 = vmatpush1.bf16.msra.mxu0 0
  %165 = vmatprep.mubr.bf16.mxu0 0
  %166 = vmatmul.mubr.bf16.gmra.mrb[0].mxu0 %v103
  %v167 = vpop.f32.mrb[0].mxu0
  %v168 = vadd.f32 %v48, %v167
  %v169 = vpop.f32.mrb[0].mxu0
  %v170 = vpop.f32.mrb[0].mxu0
  %v171 = vadd.f32 %v48, %v170
  %v172 = vpop.f32.mrb[0].mxu0
  %173 = vmatprep.mubr.bf16.mxu0 0
  %174 = vmatmul.mubr.bf16.gmra.mrb[0].mxu0 %v106
  %v175 = vpop.f32.mrb[0].mxu0
  %v176 = vadd.f32 %v48, %v175
  %v177 = vpop.f32.mrb[0].mxu0
  %v178 = vpop.f32.mrb[0].mxu0
  %v179 = vadd.f32 %v48, %v178
  %v180 = vpop.f32.mrb[0].mxu0
  %181 = vmatprep.mubr.bf16.mxu0 0
  %182 = vmatmul.mubr.bf16.gmra.mrb[0].mxu0 %v109
  %v183 = vpop.f32.mrb[0].mxu0
  %v184 = vadd.f32 %v48, %v183
  %v185 = vpop.f32.mrb[0].mxu0
  %v186 = vpop.f32.mrb[0].mxu0
  %v187 = vadd.f32 %v48, %v186
  %v188 = vpop.f32.mrb[0].mxu0
  %189 = vmatprep.mubr.bf16.mxu0 0
  %190 = vmatmul.mubr.bf16.gmra.mrb[0].mxu0 %v112
  %v191 = vpop.f32.mrb[0].mxu0
  %v192 = vadd.f32 %v48, %v191
  %v193 = vpop.f32.mrb[0].mxu0
  %v194 = vpop.f32.mrb[0].mxu0
  %v195 = vadd.f32 %v48, %v194
  %v196 = vpop.f32.mrb[0].mxu0
  %197 = vmatprep.mubr.bf16.mxu0 0
  %198 = vmatmul.mubr.bf16.gmra.mrb[0].mxu0 %v115
  %v199 = vpop.f32.mrb[0].mxu0
  %v200 = vadd.f32 %v48, %v199
  %v201 = vpop.f32.mrb[0].mxu0
  %v202 = vpop.f32.mrb[0].mxu0
  %v203 = vadd.f32 %v48, %v202
  %v204 = vpop.f32.mrb[0].mxu0
  %205 = vmatprep.mubr.bf16.mxu0 0
  %206 = vmatmul.mubr.bf16.gmra.mrb[0].mxu0 %v118
  %v207 = vpop.f32.mrb[0].mxu0
  %v208 = vadd.f32 %v48, %v207
  %v209 = vpop.f32.mrb[0].mxu0
  %v210 = vpop.f32.mrb[0].mxu0
  %v211 = vadd.f32 %v48, %v210
  %v212 = vpop.f32.mrb[0].mxu0
  %213 = vmatprep.mubr.bf16.mxu0 0
  %214 = vmatmul.mubr.bf16.gmra.mrb[0].mxu0 %v121
  %v215 = vpop.f32.mrb[0].mxu0
  %v216 = vadd.f32 %v48, %v215
  %v217 = vpop.f32.mrb[0].mxu0
  %v218 = vpop.f32.mrb[0].mxu0
  %v219 = vadd.f32 %v48, %v218
  %v220 = vpop.f32.mrb[0].mxu0
  %221 = vmatprep.mubr.bf16.mxu0 0
  %222 = vmatmul.mubr.bf16.gmra.mrb[0].mxu0 %v124
  %v223 = vpop.f32.mrb[0].mxu0
  %v224 = vadd.f32 %v48, %v223
  %v225 = vpop.f32.mrb[0].mxu0
  %v226 = vpop.f32.mrb[0].mxu0
  %v227 = vadd.f32 %v48, %v226
  %v228 = vpop.f32.mrb[0].mxu0
  %229 = vdwg.mxu0
  %v230 = vxor.u32 %v168, 2147483648
  %v231 = vxor.u32 %v171, 2147483648
  %v232 = vxor.u32 %v176, 2147483648
  %v233 = vxor.u32 %v179, 2147483648
  %v234 = vxor.u32 %v184, 2147483648
  %v235 = vxor.u32 %v187, 2147483648
  %v236 = vxor.u32 %v192, 2147483648
  %v237 = vxor.u32 %v195, 2147483648
  %v238 = vxor.u32 %v200, 2147483648
  %v239 = vxor.u32 %v203, 2147483648
  %v240 = vxor.u32 %v208, 2147483648
  %v241 = vxor.u32 %v211, 2147483648
  %v242 = vxor.u32 %v216, 2147483648
  %v243 = vxor.u32 %v219, 2147483648
  %v244 = vxor.u32 %v224, 2147483648
  %v245 = vxor.u32 %v227, 2147483648
  %v246 = vmul.f32 %v230, 1.442695
  %v247 = vpow.pop %v246
  %v248 = vmul.f32 %v231, 1.442695
  %v249 = vpow.pop %v248
  %v250 = vmul.f32 %v232, 1.442695
  %v251 = vpow.pop %v250
  %v252 = vmul.f32 %v233, 1.442695
  %v253 = vpow.pop %v252
  %v254 = vmul.f32 %v234, 1.442695
  %v255 = vpow.pop %v254
  %v256 = vmul.f32 %v235, 1.442695
  %v257 = vpow.pop %v256
  %v258 = vmul.f32 %v236, 1.442695
  %v259 = vpow.pop %v258
  %v260 = vmul.f32 %v237, 1.442695
  %v261 = vpow.pop %v260
  %v262 = vmul.f32 %v238, 1.442695
  %v263 = vpow.pop %v262
  %v264 = vmul.f32 %v239, 1.442695
  %v265 = vpow.pop %v264
  %v266 = vmul.f32 %v240, 1.442695
  %v267 = vpow.pop %v266
  %v268 = vmul.f32 %v241, 1.442695
  %v269 = vpow.pop %v268
  %v270 = vmul.f32 %v242, 1.442695
  %v271 = vpow.pop %v270
  %v272 = vmul.f32 %v243, 1.442695
  %v273 = vpow.pop %v272
  %v274 = vmul.f32 %v244, 1.442695
  %v275 = vpow.pop %v274
  %v276 = vmul.f32 %v245, 1.442695
  %v277 = vpow.pop %v276
  %v278 = vadd.f32 %v247, 1.0
  %v279 = vadd.f32 %v249, 1.0
  %v280 = vadd.f32 %v251, 1.0
  %v281 = vadd.f32 %v253, 1.0
  %v282 = vadd.f32 %v255, 1.0
  %v283 = vadd.f32 %v257, 1.0
  %v284 = vadd.f32 %v259, 1.0
  %v285 = vadd.f32 %v261, 1.0
  %v286 = vadd.f32 %v263, 1.0
  %v287 = vadd.f32 %v265, 1.0
  %v288 = vadd.f32 %v267, 1.0
  %v289 = vadd.f32 %v269, 1.0
  %v290 = vadd.f32 %v271, 1.0
  %v291 = vadd.f32 %v273, 1.0
  %v292 = vadd.f32 %v275, 1.0
  %v293 = vadd.f32 %v277, 1.0
  %v294 = vrcp.pop %v278
  %v295 = vmul.f32 1.0, %v294
  %v296 = vrcp.pop %v279
  %v297 = vmul.f32 1.0, %v296
  %v298 = vrcp.pop %v280
  %v299 = vmul.f32 1.0, %v298
  %v300 = vrcp.pop %v281
  %v301 = vmul.f32 1.0, %v300
  %v302 = vrcp.pop %v282
  %v303 = vmul.f32 1.0, %v302
  %v304 = vrcp.pop %v283
  %v305 = vmul.f32 1.0, %v304
  %v306 = vrcp.pop %v284
  %v307 = vmul.f32 1.0, %v306
  %v308 = vrcp.pop %v285
  %v309 = vmul.f32 1.0, %v308
  %v310 = vrcp.pop %v286
  %v311 = vmul.f32 1.0, %v310
  %v312 = vrcp.pop %v287
  %v313 = vmul.f32 1.0, %v312
  %v314 = vrcp.pop %v288
  %v315 = vmul.f32 1.0, %v314
  %v316 = vrcp.pop %v289
  %v317 = vmul.f32 1.0, %v316
  %v318 = vrcp.pop %v290
  %v319 = vmul.f32 1.0, %v318
  %v320 = vrcp.pop %v291
  %v321 = vmul.f32 1.0, %v320
  %v322 = vrcp.pop %v292
  %v323 = vmul.f32 1.0, %v322
  %v324 = vrcp.pop %v293
  %v325 = vmul.f32 1.0, %v324
  %v326 = vmul.f32 %v168, %v295
  %v327 = vmul.f32 %v171, %v297
  %v328 = vmul.f32 %v176, %v299
  %v329 = vmul.f32 %v179, %v301
  %v330 = vmul.f32 %v184, %v303
  %v331 = vmul.f32 %v187, %v305
  %v332 = vmul.f32 %v192, %v307
  %v333 = vmul.f32 %v195, %v309
  %v334 = vmul.f32 %v200, %v311
  %v335 = vmul.f32 %v203, %v313
  %v336 = vmul.f32 %v208, %v315
  %v337 = vmul.f32 %v211, %v317
  %v338 = vmul.f32 %v216, %v319
  %v339 = vmul.f32 %v219, %v321
  %v340 = vmul.f32 %v224, %v323
  %v341 = vmul.f32 %v227, %v325
  %v342 = vpack.c.bf16 %v327, %v326
  %v343 = vpack.c.bf16 %v329, %v328
  %v344 = vpack.c.bf16 %v331, %v330
  %v345 = vpack.c.bf16 %v333, %v332
  %v346 = vpack.c.bf16 %v335, %v334
  %v347 = vpack.c.bf16 %v337, %v336
  %v348 = vpack.c.bf16 %v339, %v338
  %v349 = vpack.c.bf16 %v341, %v340
  %v358 = vunpack.c.l.b16 %v342
  %v359 = vunpack.c.h.b16 %v342
  %v360 = vunpack.c.l.b16 %v343
  %v361 = vunpack.c.h.b16 %v343
  %v362 = vunpack.c.l.b16 %v344
  %v363 = vunpack.c.h.b16 %v344
  %v364 = vunpack.c.l.b16 %v345
  %v365 = vunpack.c.h.b16 %v345
  %v366 = vunpack.c.l.b16 %v346
  %v367 = vunpack.c.h.b16 %v346
  %v368 = vunpack.c.l.b16 %v347
  %v369 = vunpack.c.h.b16 %v347
  %v370 = vunpack.c.l.b16 %v348
  %v371 = vunpack.c.h.b16 %v348
  %v372 = vunpack.c.l.b16 %v349
  %v373 = vunpack.c.h.b16 %v349
  %v374 = vpack.c.b16 %v358, %v358
  %v375 = vpack.c.b16 %v359, %v359
  %v376 = vpack.c.b16 %v360, %v360
  %v377 = vpack.c.b16 %v361, %v361
  %v378 = vpack.c.b16 %v362, %v362
  %v379 = vpack.c.b16 %v363, %v363
  %v380 = vpack.c.b16 %v364, %v364
  %v381 = vpack.c.b16 %v365, %v365
  %v382 = vpack.c.b16 %v366, %v366
  %v383 = vpack.c.b16 %v367, %v367
  %v384 = vpack.c.b16 %v368, %v368
  %v385 = vpack.c.b16 %v369, %v369
  %v386 = vpack.c.b16 %v370, %v370
  %v387 = vpack.c.b16 %v371, %v371
  %v388 = vpack.c.b16 %v372, %v372
  %v389 = vpack.c.b16 %v373, %v373
  %406 = vst [vmem:[%s5] sm:$0xf] %v374
  %407 = vst [vmem:[%s5 + $0x4] sm:$0xf] %v375
  %408 = vst [vmem:[%s5 + $0x8] sm:$0xf] %v376
  %409 = vst [vmem:[%s5 + $0xc] sm:$0xf] %v377
  %410 = vst [vmem:[%s5 + $0x10] sm:$0xf] %v378
  %411 = vst [vmem:[%s5 + $0x14] sm:$0xf] %v379
  %412 = vst [vmem:[%s5 + $0x18] sm:$0xf] %v380
  %413 = vst [vmem:[%s5 + $0x1c] sm:$0xf] %v381
  %414 = vst [vmem:[%s5 + $0x20] sm:$0xf] %v382
  %415 = vst [vmem:[%s5 + $0x24] sm:$0xf] %v383
  %416 = vst [vmem:[%s5 + $0x28] sm:$0xf] %v384
  %417 = vst [vmem:[%s5 + $0x2c] sm:$0xf] %v385
  %418 = vst [vmem:[%s5 + $0x30] sm:$0xf] %v386
  %419 = vst [vmem:[%s5 + $0x34] sm:$0xf] %v387
  %420 = vst [vmem:[%s5 + $0x38] sm:$0xf] %v388
  %421 = vst [vmem:[%s5 + $0x3c] sm:$0xf] %v389
  %v422 = vld [vmem:[%s3] sm:$0xf]
  %v423 = vld [vmem:[%s3 + $0x4] sm:$0xf]
  %v424 = vld [vmem:[%s3 + $0x8] sm:$0xf]
  %v425 = vld [vmem:[%s3 + $0xc] sm:$0xf]
  %v426 = vld [vmem:[%s3 + $0x10] sm:$0xf]
  %v427 = vld [vmem:[%s3 + $0x14] sm:$0xf]
  %v428 = vld [vmem:[%s3 + $0x18] sm:$0xf]
  %v429 = vld [vmem:[%s3 + $0x1c] sm:$0xf]
  %v430 = vld [vmem:[%s3 + $0x20] sm:$0xf]
  %v431 = vld [vmem:[%s3 + $0x24] sm:$0xf]
  %v432 = vld [vmem:[%s3 + $0x28] sm:$0xf]
  %v433 = vld [vmem:[%s3 + $0x2c] sm:$0xf]
  %v434 = vld [vmem:[%s3 + $0x30] sm:$0xf]
  %v435 = vld [vmem:[%s3 + $0x34] sm:$0xf]
  %v436 = vld [vmem:[%s3 + $0x38] sm:$0xf]
  %v437 = vld [vmem:[%s3 + $0x3c] sm:$0xf]
  %v438 = vld [vmem:[%s4] sm:$0x1]
  %v440 = vlaneseq
  %v441 = vshrl.u32 %v440, 7
  %v442 = vsub.s32 0, %v441
  %v443 = vrot.slane %v438, %v442
  %v461 = vunpack.c.l.b16 %v422
  %v462 = vunpack.c.l.b16 %v423
  %v463 = vunpack.c.l.b16 %v424
  %v464 = vunpack.c.l.b16 %v425
  %v465 = vunpack.c.l.b16 %v426
  %v466 = vunpack.c.l.b16 %v427
  %v467 = vunpack.c.l.b16 %v428
  %v468 = vunpack.c.l.b16 %v429
  %v469 = vunpack.c.l.b16 %v430
  %v470 = vunpack.c.l.b16 %v431
  %v471 = vunpack.c.l.b16 %v432
  %v472 = vunpack.c.l.b16 %v433
  %v473 = vunpack.c.l.b16 %v434
  %v474 = vunpack.c.l.b16 %v435
  %v475 = vunpack.c.l.b16 %v436
  %v476 = vunpack.c.l.b16 %v437
  %v477 = vpack.c.b16 %v462, %v461
  %v478 = vpack.c.b16 %v464, %v463
  %v479 = vpack.c.b16 %v466, %v465
  %v480 = vpack.c.b16 %v468, %v467
  %v481 = vpack.c.b16 %v470, %v469
  %v482 = vpack.c.b16 %v472, %v471
  %v483 = vpack.c.b16 %v474, %v473
  %v484 = vpack.c.b16 %v476, %v475
  %493 = vmatprep.subr.bf16.mxu0 0
  %494 = vmatpush1.bf16.msra.mxu0 %v477
  %495 = vmatprep.subr.bf16.mxu0 0
  %496 = vmatpush1.bf16.msra.mxu0 %v478
  %497 = vmatprep.subr.bf16.mxu0 0
  %498 = vmatpush1.bf16.msra.mxu0 %v479
  %499 = vmatprep.subr.bf16.mxu0 0
  %500 = vmatpush1.bf16.msra.mxu0 %v480
  %501 = vmatprep.subr.bf16.mxu0 0
  %502 = vmatpush1.bf16.msra.mxu0 %v481
  %503 = vmatprep.subr.bf16.mxu0 0
  %504 = vmatpush1.bf16.msra.mxu0 %v482
  %505 = vmatprep.subr.bf16.mxu0 0
  %506 = vmatpush1.bf16.msra.mxu0 %v483
  %507 = vmatprep.subr.bf16.mxu0 0
  %508 = vmatpush1.bf16.msra.mxu0 %v484
  %509 = vmatprep.subr.bf16.mxu0 0
  %510 = vmatpush1.bf16.msra.mxu0 0
  %511 = vmatprep.subr.bf16.mxu0 0
  %512 = vmatpush1.bf16.msra.mxu0 0
  %513 = vmatprep.subr.bf16.mxu0 0
  %514 = vmatpush1.bf16.msra.mxu0 0
  %515 = vmatprep.subr.bf16.mxu0 0
  %516 = vmatpush1.bf16.msra.mxu0 0
  %517 = vmatprep.subr.bf16.mxu0 0
  %518 = vmatpush1.bf16.msra.mxu0 0
  %519 = vmatprep.subr.bf16.mxu0 0
  %520 = vmatpush1.bf16.msra.mxu0 0
  %521 = vmatprep.subr.bf16.mxu0 0
  %522 = vmatpush1.bf16.msra.mxu0 0
  %523 = vmatprep.subr.bf16.mxu0 0
  %524 = vmatpush1.bf16.msra.mxu0 0
  %525 = vmatprep.mubr.bf16.mxu0 0
  %526 = vmatmul.mubr.bf16.gmra.mrb[0].mxu0 %v342
  %v527 = vpop.f32.mrb[0].mxu0
  %v528 = vadd.f32 %v443, %v527
  %v529 = vpop.f32.mrb[0].mxu0
  %v530 = vpop.f32.mrb[0].mxu0
  %v531 = vadd.f32 %v443, %v530
  %v532 = vpop.f32.mrb[0].mxu0
  %533 = vmatprep.mubr.bf16.mxu0 0
  %534 = vmatmul.mubr.bf16.gmra.mrb[0].mxu0 %v343
  %v535 = vpop.f32.mrb[0].mxu0
  %v536 = vadd.f32 %v443, %v535
  %v537 = vpop.f32.mrb[0].mxu0
  %v538 = vpop.f32.mrb[0].mxu0
  %v539 = vadd.f32 %v443, %v538
  %v540 = vpop.f32.mrb[0].mxu0
  %541 = vmatprep.mubr.bf16.mxu0 0
  %542 = vmatmul.mubr.bf16.gmra.mrb[0].mxu0 %v344
  %v543 = vpop.f32.mrb[0].mxu0
  %v544 = vadd.f32 %v443, %v543
  %v545 = vpop.f32.mrb[0].mxu0
  %v546 = vpop.f32.mrb[0].mxu0
  %v547 = vadd.f32 %v443, %v546
  %v548 = vpop.f32.mrb[0].mxu0
  %549 = vmatprep.mubr.bf16.mxu0 0
  %550 = vmatmul.mubr.bf16.gmra.mrb[0].mxu0 %v345
  %v551 = vpop.f32.mrb[0].mxu0
  %v552 = vadd.f32 %v443, %v551
  %v553 = vpop.f32.mrb[0].mxu0
  %v554 = vpop.f32.mrb[0].mxu0
  %v555 = vadd.f32 %v443, %v554
  %v556 = vpop.f32.mrb[0].mxu0
  %557 = vmatprep.mubr.bf16.mxu0 0
  %558 = vmatmul.mubr.bf16.gmra.mrb[0].mxu0 %v346
  %v559 = vpop.f32.mrb[0].mxu0
  %v560 = vadd.f32 %v443, %v559
  %v561 = vpop.f32.mrb[0].mxu0
  %v562 = vpop.f32.mrb[0].mxu0
  %v563 = vadd.f32 %v443, %v562
  %v564 = vpop.f32.mrb[0].mxu0
  %565 = vmatprep.mubr.bf16.mxu0 0
  %566 = vmatmul.mubr.bf16.gmra.mrb[0].mxu0 %v347
  %v567 = vpop.f32.mrb[0].mxu0
  %v568 = vadd.f32 %v443, %v567
  %v569 = vpop.f32.mrb[0].mxu0
  %v570 = vpop.f32.mrb[0].mxu0
  %v571 = vadd.f32 %v443, %v570
  %v572 = vpop.f32.mrb[0].mxu0
  %573 = vmatprep.mubr.bf16.mxu0 0
  %574 = vmatmul.mubr.bf16.gmra.mrb[0].mxu0 %v348
  %v575 = vpop.f32.mrb[0].mxu0
  %v576 = vadd.f32 %v443, %v575
  %v577 = vpop.f32.mrb[0].mxu0
  %v578 = vpop.f32.mrb[0].mxu0
  %v579 = vadd.f32 %v443, %v578
  %v580 = vpop.f32.mrb[0].mxu0
  %581 = vmatprep.mubr.bf16.mxu0 0
  %582 = vmatmul.mubr.bf16.gmra.mrb[0].mxu0 %v349
  %v583 = vpop.f32.mrb[0].mxu0
  %v584 = vadd.f32 %v443, %v583
  %v585 = vpop.f32.mrb[0].mxu0
  %v586 = vpop.f32.mrb[0].mxu0
  %v587 = vadd.f32 %v443, %v586
  %v588 = vpop.f32.mrb[0].mxu0
  %589 = vdwg.mxu0
  %v590 = vxor.u32 %v528, 2147483648
  %v591 = vxor.u32 %v531, 2147483648
  %v592 = vxor.u32 %v536, 2147483648
  %v593 = vxor.u32 %v539, 2147483648
  %v594 = vxor.u32 %v544, 2147483648
  %v595 = vxor.u32 %v547, 2147483648
  %v596 = vxor.u32 %v552, 2147483648
  %v597 = vxor.u32 %v555, 2147483648
  %v598 = vxor.u32 %v560, 2147483648
  %v599 = vxor.u32 %v563, 2147483648
  %v600 = vxor.u32 %v568, 2147483648
  %v601 = vxor.u32 %v571, 2147483648
  %v602 = vxor.u32 %v576, 2147483648
  %v603 = vxor.u32 %v579, 2147483648
  %v604 = vxor.u32 %v584, 2147483648
  %v605 = vxor.u32 %v587, 2147483648
  %v606 = vmul.f32 %v590, 1.442695
  %v607 = vpow.pop %v606
  %v608 = vmul.f32 %v591, 1.442695
  %v609 = vpow.pop %v608
  %v610 = vmul.f32 %v592, 1.442695
  %v611 = vpow.pop %v610
  %v612 = vmul.f32 %v593, 1.442695
  %v613 = vpow.pop %v612
  %v614 = vmul.f32 %v594, 1.442695
  %v615 = vpow.pop %v614
  %v616 = vmul.f32 %v595, 1.442695
  %v617 = vpow.pop %v616
  %v618 = vmul.f32 %v596, 1.442695
  %v619 = vpow.pop %v618
  %v620 = vmul.f32 %v597, 1.442695
  %v621 = vpow.pop %v620
  %v622 = vmul.f32 %v598, 1.442695
  %v623 = vpow.pop %v622
  %v624 = vmul.f32 %v599, 1.442695
  %v625 = vpow.pop %v624
  %v626 = vmul.f32 %v600, 1.442695
  %v627 = vpow.pop %v626
  %v628 = vmul.f32 %v601, 1.442695
  %v629 = vpow.pop %v628
  %v630 = vmul.f32 %v602, 1.442695
  %v631 = vpow.pop %v630
  %v632 = vmul.f32 %v603, 1.442695
  %v633 = vpow.pop %v632
  %v634 = vmul.f32 %v604, 1.442695
  %v635 = vpow.pop %v634
  %v636 = vmul.f32 %v605, 1.442695
  %v637 = vpow.pop %v636
  %v638 = vadd.f32 %v607, 1.0
  %v639 = vadd.f32 %v609, 1.0
  %v640 = vadd.f32 %v611, 1.0
  %v641 = vadd.f32 %v613, 1.0
  %v642 = vadd.f32 %v615, 1.0
  %v643 = vadd.f32 %v617, 1.0
  %v644 = vadd.f32 %v619, 1.0
  %v645 = vadd.f32 %v621, 1.0
  %v646 = vadd.f32 %v623, 1.0
  %v647 = vadd.f32 %v625, 1.0
  %v648 = vadd.f32 %v627, 1.0
  %v649 = vadd.f32 %v629, 1.0
  %v650 = vadd.f32 %v631, 1.0
  %v651 = vadd.f32 %v633, 1.0
  %v652 = vadd.f32 %v635, 1.0
  %v653 = vadd.f32 %v637, 1.0
  %v654 = vrcp.pop %v638
  %v655 = vmul.f32 1.0, %v654
  %v656 = vrcp.pop %v639
  %v657 = vmul.f32 1.0, %v656
  %v658 = vrcp.pop %v640
  %v659 = vmul.f32 1.0, %v658
  %v660 = vrcp.pop %v641
  %v661 = vmul.f32 1.0, %v660
  %v662 = vrcp.pop %v642
  %v663 = vmul.f32 1.0, %v662
  %v664 = vrcp.pop %v643
  %v665 = vmul.f32 1.0, %v664
  %v666 = vrcp.pop %v644
  %v667 = vmul.f32 1.0, %v666
  %v668 = vrcp.pop %v645
  %v669 = vmul.f32 1.0, %v668
  %v670 = vrcp.pop %v646
  %v671 = vmul.f32 1.0, %v670
  %v672 = vrcp.pop %v647
  %v673 = vmul.f32 1.0, %v672
  %v674 = vrcp.pop %v648
  %v675 = vmul.f32 1.0, %v674
  %v676 = vrcp.pop %v649
  %v677 = vmul.f32 1.0, %v676
  %v678 = vrcp.pop %v650
  %v679 = vmul.f32 1.0, %v678
  %v680 = vrcp.pop %v651
  %v681 = vmul.f32 1.0, %v680
  %v682 = vrcp.pop %v652
  %v683 = vmul.f32 1.0, %v682
  %v684 = vrcp.pop %v653
  %v685 = vmul.f32 1.0, %v684
  %v686 = vmul.f32 %v528, %v655
  %v687 = vmul.f32 %v531, %v657
  %v688 = vmul.f32 %v536, %v659
  %v689 = vmul.f32 %v539, %v661
  %v690 = vmul.f32 %v544, %v663
  %v691 = vmul.f32 %v547, %v665
  %v692 = vmul.f32 %v552, %v667
  %v693 = vmul.f32 %v555, %v669
  %v694 = vmul.f32 %v560, %v671
  %v695 = vmul.f32 %v563, %v673
  %v696 = vmul.f32 %v568, %v675
  %v697 = vmul.f32 %v571, %v677
  %v698 = vmul.f32 %v576, %v679
  %v699 = vmul.f32 %v579, %v681
  %v700 = vmul.f32 %v584, %v683
  %v701 = vmul.f32 %v587, %v685
  %v702 = vpack.c.bf16 %v687, %v686
  %v703 = vpack.c.bf16 %v689, %v688
  %v704 = vpack.c.bf16 %v691, %v690
  %v705 = vpack.c.bf16 %v693, %v692
  %v706 = vpack.c.bf16 %v695, %v694
  %v707 = vpack.c.bf16 %v697, %v696
  %v708 = vpack.c.bf16 %v699, %v698
  %v709 = vpack.c.bf16 %v701, %v700
  %v718 = vunpack.c.l.b16 %v702
  %v719 = vunpack.c.h.b16 %v702
  %v720 = vunpack.c.l.b16 %v703
  %v721 = vunpack.c.h.b16 %v703
  %v722 = vunpack.c.l.b16 %v704
  %v723 = vunpack.c.h.b16 %v704
  %v724 = vunpack.c.l.b16 %v705
  %v725 = vunpack.c.h.b16 %v705
  %v726 = vunpack.c.l.b16 %v706
  %v727 = vunpack.c.h.b16 %v706
  %v728 = vunpack.c.l.b16 %v707
  %v729 = vunpack.c.h.b16 %v707
  %v730 = vunpack.c.l.b16 %v708
  %v731 = vunpack.c.h.b16 %v708
  %v732 = vunpack.c.l.b16 %v709
  %v733 = vunpack.c.h.b16 %v709
  %v734 = vpack.c.b16 %v718, %v718
  %v735 = vpack.c.b16 %v719, %v719
  %v736 = vpack.c.b16 %v720, %v720
  %v737 = vpack.c.b16 %v721, %v721
  %v738 = vpack.c.b16 %v722, %v722
  %v739 = vpack.c.b16 %v723, %v723
  %v740 = vpack.c.b16 %v724, %v724
  %v741 = vpack.c.b16 %v725, %v725
  %v742 = vpack.c.b16 %v726, %v726
  %v743 = vpack.c.b16 %v727, %v727
  %v744 = vpack.c.b16 %v728, %v728
  %v745 = vpack.c.b16 %v729, %v729
  %v746 = vpack.c.b16 %v730, %v730
  %v747 = vpack.c.b16 %v731, %v731
  %v748 = vpack.c.b16 %v732, %v732
  %v749 = vpack.c.b16 %v733, %v733
  %766 = vst [vmem:[%s6] sm:$0xf] %v734
  %767 = vst [vmem:[%s6 + $0x4] sm:$0xf] %v735
  %768 = vst [vmem:[%s6 + $0x8] sm:$0xf] %v736
  %769 = vst [vmem:[%s6 + $0xc] sm:$0xf] %v737
  %770 = vst [vmem:[%s6 + $0x10] sm:$0xf] %v738
  %771 = vst [vmem:[%s6 + $0x14] sm:$0xf] %v739
  %772 = vst [vmem:[%s6 + $0x18] sm:$0xf] %v740
  %773 = vst [vmem:[%s6 + $0x1c] sm:$0xf] %v741
  %774 = vst [vmem:[%s6 + $0x20] sm:$0xf] %v742
  %775 = vst [vmem:[%s6 + $0x24] sm:$0xf] %v743
  %776 = vst [vmem:[%s6 + $0x28] sm:$0xf] %v744
  %777 = vst [vmem:[%s6 + $0x2c] sm:$0xf] %v745
  %778 = vst [vmem:[%s6 + $0x30] sm:$0xf] %v746
  %779 = vst [vmem:[%s6 + $0x34] sm:$0xf] %v747
  %780 = vst [vmem:[%s6 + $0x38] sm:$0xf] %v748
  %781 = vst [vmem:[%s6 + $0x3c] sm:$0xf] %v749
  // Predicated region
  $region22: #{enetv2_forward.3} parent=0 // pred_check
    _
  $region23: #{enetv2_forward.3} parent=0 // pred_check_branch
    %783 = sbr.rel (0) target = $region25
  $region24: #{enetv2_forward.3} parent=0 // pred_region
    _
  $region25: #{enetv2_forward.3} parent=0 // pred_fallthru
    _
  // Predicated region
  $region26: #{enetv2_forward.3} parent=0 // pred_check
    _
  $region27: #{enetv2_forward.3} parent=0 // pred_check_branch
    %785 = sbr.rel (0) target = $region29
  $region28: #{enetv2_forward.3} parent=0 // pred_region
    _
  $region29: #{enetv2_forward.3} parent=0 // pred_fallthru
    _
  // Predicated region
  $region30: #{enetv2_forward.3} parent=0 // pred_check
    _
  $region31: #{enetv2_forward.3} parent=0 // pred_check_branch
    %787 = sbr.rel (0) target = $region33
  $region32: #{enetv2_forward.3} parent=0 // pred_region
    _
  $region33: #{enetv2_forward.3} parent=0 // pred_fallthru
    _
  // Predicated region
  $region34: #{enetv2_forward.3} parent=0 // pred_check
    _
  $region35: #{enetv2_forward.3} parent=0 // pred_check_branch
    %789 = sbr.rel (0) target = $region37
  $region36: #{enetv2_forward.3} parent=0 // pred_region
    _
  $region37: #{enetv2_forward.3} parent=0 // pred_fallthru
    _

// kernel: enetv2_forward.4
$region0: #{enetv2_forward.4}
  #allocation0 [shape = 'u32[]', space=smem, size = 0x4, offset = 0x4, fixed_abs, tag = 'smem constant byte address 0x4 - core index']
  #allocation1 [shape = 'u32[144,128]{1,0:T(1,128)}', space=vmem, size = 0x12000, scoped, tag = 'internal scratch']
  %s0 = inlined_call_operand.vmem [shape: bf16[2,10,10,128], index: 0, kind: input, shape index: {}]
  %s1 = inlined_call_operand.vmem [shape: bf16[2,64,128], index: 1, kind: input, shape index: {}]
  %s2 = inlined_call_operand.vmem [shape: f32[9,128], index: 2, kind: input, shape index: {}]
  %s3 = inlined_call_operand.vmem [shape: f32[1,128], index: 3, kind: input, shape index: {}]
  %s4 = inlined_call_operand.vmem [shape: bf16[128,128], index: 4, kind: input, shape index: {}]
  %s5 = inlined_call_operand.vmem [shape: f32[1,128], index: 5, kind: input, shape index: {}]
  %s6 = inlined_call_operand.vmem [shape: bf16[128,128], index: 6, kind: input, shape index: {}]
  %s7 = inlined_call_operand.vmem [shape: f32[1,128], index: 7, kind: input, shape index: {}]
  %s8 = inlined_call_operand.vmem [shape: bf16[128,128], index: 8, kind: input, shape index: {}]
  %s9 = inlined_call_operand.vmem [shape: f32[1,128], index: 9, kind: input, shape index: {}]
  %s10 = inlined_call_operand.vmem [shape: bf16[2,64,128], index: 10, kind: output, shape index: {}]
  %s11 = sld [smem:[#allocation0]]
  $region73: #{enetv2_forward.4} parent=0
    _
  %s13 = ssub.s32 1, %s11
  %s14 = scalar_select 0, %s13, %s11
  loop: start=0, step=1, limit=4
  $region2: #{enetv2_forward.4} parent=0 // loop_pre_header
    _
  $region3: #{enetv2_forward.4} parent=0 // loop_header
    %s16 = sphi 0, %s20
    %p17 = scmp.ge.s32.totalorder %s16, 4
    %s26 = sphi 0, %s28
    %s29 = sphi 0, %s26
    %s30 = sphi 0, %s29
    %s46 = sphi 0, %s30
    %s52 = sphi 0, %s54
    %s55 = sphi 0, %s52
    %s56 = sphi 0, %s55
    %s72 = sphi 0, %s56
    %s76 = sphi 0, %s76
    %s78 = sphi 0, %s76
    %s79 = sphi 0, %s78
    %s93 = sphi 0, %s79
    %s97 = sphi 0, %s97
    %s99 = sphi 0, %s97
    %s100 = sphi 0, %s99
    %s114 = sphi 0, %s100
    %s118 = sphi 0, %s118
    %s120 = sphi 0, %s118
    %s121 = sphi 0, %s120
    %s135 = sphi 0, %s121
    %s139 = sphi 0, %s139
    %s141 = sphi 0, %s139
    %s142 = sphi 0, %s141
    %s156 = sphi 0, %s142
    %s160 = sphi 0, %s160
    %s162 = sphi 0, %s160
    %s163 = sphi 0, %s162
    %s177 = sphi 0, %s163
    %s181 = sphi 0, %s181
    %s183 = sphi 0, %s181
    %s184 = sphi 0, %s183
    %s198 = sphi 0, %s184
    %s202 = sphi 0, %s202
    %s204 = sphi 0, %s202
    %s205 = sphi 0, %s204
    %s219 = sphi 0, %s205
    %s223 = sphi 0, %s223
    %s225 = sphi 0, %s223
    %s226 = sphi 0, %s225
    %s240 = sphi 0, %s226
    %s246 = sphi 0, %s248
    %s249 = sphi 0, %s246
    %s250 = sphi 0, %s249
    %s266 = sphi 0, %s250
  $region4: #{enetv2_forward.4} parent=0 // loop_header_branch
    %19 = sbr.rel (%p17) target = $region8
  $region5: #{enetv2_forward.4} parent=0 // loop_body
    %s21 = ssub.s32 %s16, 1
    %s22 = ssub.s32 %s16, 2
    %s23 = sadd.s32 %s16, 1
    %s24 = ssub.s32 %s16, %s23
    %p25 = scmp.eq.s32.totalorder %s24, 0
    %s27 = sadd.s32 %s26, 1
    %s28 = scalar_select %p25, %s26, %s27
    %p31 = pneg %p25
    %p32 = scmp.eq.s32.totalorder %s16, 1
    %p33 = por %p31, %p32
    %p34 = scmp.ne.s32.totalorder %s26, %s29
    %p35 = scmp.eq.s32.totalorder %s16, 0
    %p36 = por %p34, %p35
    %p37 = scmp.ne.s32.totalorder %s26, %s29
    %p38 = scmp.eq.s32.totalorder %s21, 1
    %p39 = por %p37, %p38
    %p40 = scmp.ne.s32.totalorder %s29, %s30
    %p41 = scmp.eq.s32.totalorder %s21, 0
    %p42 = por %p40, %p41
    %p43 = scmp.ne.s32.totalorder %s29, %s30
    %p44 = scmp.eq.s32.totalorder %s22, 1
    %p45 = por %p43, %p44
    %p47 = scmp.ne.s32.totalorder %s30, %s46
    %p48 = scmp.eq.s32.totalorder %s22, 0
    %p49 = por %p47, %p48
    %s50 = ssub.s32 %s16, %s23
    %p51 = scmp.eq.s32.totalorder %s50, 0
    %s53 = sadd.s32 %s52, 1
    %s54 = scalar_select %p51, %s52, %s53
    %p57 = pneg %p51
    %p58 = scmp.eq.s32.totalorder %s16, 1
    %p59 = por %p57, %p58
    %p60 = scmp.ne.s32.totalorder %s52, %s55
    %p61 = scmp.eq.s32.totalorder %s16, 0
    %p62 = por %p60, %p61
    %p63 = scmp.ne.s32.totalorder %s52, %s55
    %p64 = scmp.eq.s32.totalorder %s21, 1
    %p65 = por %p63, %p64
    %p66 = scmp.ne.s32.totalorder %s55, %s56
    %p67 = scmp.eq.s32.totalorder %s21, 0
    %p68 = por %p66, %p67
    %p69 = scmp.ne.s32.totalorder %s55, %s56
    %p70 = scmp.eq.s32.totalorder %s22, 1
    %p71 = por %p69, %p70
    %p73 = scmp.ne.s32.totalorder %s56, %s72
    %p74 = scmp.eq.s32.totalorder %s22, 0
    %p75 = por %p73, %p74
    %s77 = sadd.s32 %s76, 1
    %p80 = scmp.eq.s32.totalorder %s16, 1
    %p81 = scmp.ne.s32.totalorder %s76, %s78
    %p82 = scmp.eq.s32.totalorder %s16, 0
    %p83 = por %p81, %p82
    %p84 = scmp.ne.s32.totalorder %s76, %s78
    %p85 = scmp.eq.s32.totalorder %s21, 1
    %p86 = por %p84, %p85
    %p87 = scmp.ne.s32.totalorder %s78, %s79
    %p88 = scmp.eq.s32.totalorder %s21, 0
    %p89 = por %p87, %p88
    %p90 = scmp.ne.s32.totalorder %s78, %s79
    %p91 = scmp.eq.s32.totalorder %s22, 1
    %p92 = por %p90, %p91
    %p94 = scmp.ne.s32.totalorder %s79, %s93
    %p95 = scmp.eq.s32.totalorder %s22, 0
    %p96 = por %p94, %p95
    %s98 = sadd.s32 %s97, 1
    %p101 = scmp.eq.s32.totalorder %s16, 1
    %p102 = scmp.ne.s32.totalorder %s97, %s99
    %p103 = scmp.eq.s32.totalorder %s16, 0
    %p104 = por %p102, %p103
    %p105 = scmp.ne.s32.totalorder %s97, %s99
    %p106 = scmp.eq.s32.totalorder %s21, 1
    %p107 = por %p105, %p106
    %p108 = scmp.ne.s32.totalorder %s99, %s100
    %p109 = scmp.eq.s32.totalorder %s21, 0
    %p110 = por %p108, %p109
    %p111 = scmp.ne.s32.totalorder %s99, %s100
    %p112 = scmp.eq.s32.totalorder %s22, 1
    %p113 = por %p111, %p112
    %p115 = scmp.ne.s32.totalorder %s100, %s114
    %p116 = scmp.eq.s32.totalorder %s22, 0
    %p117 = por %p115, %p116
    %s119 = sadd.s32 %s118, 1
    %p122 = scmp.eq.s32.totalorder %s16, 1
    %p123 = scmp.ne.s32.totalorder %s118, %s120
    %p124 = scmp.eq.s32.totalorder %s16, 0
    %p125 = por %p123, %p124
    %p126 = scmp.ne.s32.totalorder %s118, %s120
    %p127 = scmp.eq.s32.totalorder %s21, 1
    %p128 = por %p126, %p127
    %p129 = scmp.ne.s32.totalorder %s120, %s121
    %p130 = scmp.eq.s32.totalorder %s21, 0
    %p131 = por %p129, %p130
    %p132 = scmp.ne.s32.totalorder %s120, %s121
    %p133 = scmp.eq.s32.totalorder %s22, 1
    %p134 = por %p132, %p133
    %p136 = scmp.ne.s32.totalorder %s121, %s135
    %p137 = scmp.eq.s32.totalorder %s22, 0
    %p138 = por %p136, %p137
    %s140 = sadd.s32 %s139, 1
    %p143 = scmp.eq.s32.totalorder %s16, 1
    %p144 = scmp.ne.s32.totalorder %s139, %s141
    %p145 = scmp.eq.s32.totalorder %s16, 0
    %p146 = por %p144, %p145
    %p147 = scmp.ne.s32.totalorder %s139, %s141
    %p148 = scmp.eq.s32.totalorder %s21, 1
    %p149 = por %p147, %p148
    %p150 = scmp.ne.s32.totalorder %s141, %s142
    %p151 = scmp.eq.s32.totalorder %s21, 0
    %p152 = por %p150, %p151
    %p153 = scmp.ne.s32.totalorder %s141, %s142
    %p154 = scmp.eq.s32.totalorder %s22, 1
    %p155 = por %p153, %p154
    %p157 = scmp.ne.s32.totalorder %s142, %s156
    %p158 = scmp.eq.s32.totalorder %s22, 0
    %p159 = por %p157, %p158
    %s161 = sadd.s32 %s160, 1
    %p164 = scmp.eq.s32.totalorder %s16, 1
    %p165 = scmp.ne.s32.totalorder %s160, %s162
    %p166 = scmp.eq.s32.totalorder %s16, 0
    %p167 = por %p165, %p166
    %p168 = scmp.ne.s32.totalorder %s160, %s162
    %p169 = scmp.eq.s32.totalorder %s21, 1
    %p170 = por %p168, %p169
    %p171 = scmp.ne.s32.totalorder %s162, %s163
    %p172 = scmp.eq.s32.totalorder %s21, 0
    %p173 = por %p171, %p172
    %p174 = scmp.ne.s32.totalorder %s162, %s163
    %p175 = scmp.eq.s32.totalorder %s22, 1
    %p176 = por %p174, %p175
    %p178 = scmp.ne.s32.totalorder %s163, %s177
    %p179 = scmp.eq.s32.totalorder %s22, 0
    %p180 = por %p178, %p179
    %s182 = sadd.s32 %s181, 1
    %p185 = scmp.eq.s32.totalorder %s16, 1
    %p186 = scmp.ne.s32.totalorder %s181, %s183
    %p187 = scmp.eq.s32.totalorder %s16, 0
    %p188 = por %p186, %p187
    %p189 = scmp.ne.s32.totalorder %s181, %s183
    %p190 = scmp.eq.s32.totalorder %s21, 1
    %p191 = por %p189, %p190
    %p192 = scmp.ne.s32.totalorder %s183, %s184
    %p193 = scmp.eq.s32.totalorder %s21, 0
    %p194 = por %p192, %p193
    %p195 = scmp.ne.s32.totalorder %s183, %s184
    %p196 = scmp.eq.s32.totalorder %s22, 1
    %p197 = por %p195, %p196
    %p199 = scmp.ne.s32.totalorder %s184, %s198
    %p200 = scmp.eq.s32.totalorder %s22, 0
    %p201 = por %p199, %p200
    %s203 = sadd.s32 %s202, 1
    %p206 = scmp.eq.s32.totalorder %s16, 1
    %p207 = scmp.ne.s32.totalorder %s202, %s204
    %p208 = scmp.eq.s32.totalorder %s16, 0
    %p209 = por %p207, %p208
    %p210 = scmp.ne.s32.totalorder %s202, %s204
    %p211 = scmp.eq.s32.totalorder %s21, 1
    %p212 = por %p210, %p211
    %p213 = scmp.ne.s32.totalorder %s204, %s205
    %p214 = scmp.eq.s32.totalorder %s21, 0
    %p215 = por %p213, %p214
    %p216 = scmp.ne.s32.totalorder %s204, %s205
    %p217 = scmp.eq.s32.totalorder %s22, 1
    %p218 = por %p216, %p217
    %p220 = scmp.ne.s32.totalorder %s205, %s219
    %p221 = scmp.eq.s32.totalorder %s22, 0
    %p222 = por %p220, %p221
    %s224 = sadd.s32 %s223, 1
    %p227 = scmp.eq.s32.totalorder %s16, 1
    %p228 = scmp.ne.s32.totalorder %s223, %s225
    %p229 = scmp.eq.s32.totalorder %s16, 0
    %p230 = por %p228, %p229
    %p231 = scmp.ne.s32.totalorder %s223, %s225
    %p232 = scmp.eq.s32.totalorder %s21, 1
    %p233 = por %p231, %p232
    %p234 = scmp.ne.s32.totalorder %s225, %s226
    %p235 = scmp.eq.s32.totalorder %s21, 0
    %p236 = por %p234, %p235
    %p237 = scmp.ne.s32.totalorder %s225, %s226
    %p238 = scmp.eq.s32.totalorder %s22, 1
    %p239 = por %p237, %p238
    %p241 = scmp.ne.s32.totalorder %s226, %s240
    %p242 = scmp.eq.s32.totalorder %s22, 0
    %p243 = por %p241, %p242
    %s244 = ssub.s32 %s16, %s23
    %p245 = scmp.eq.s32.totalorder %s244, 0
    %s247 = sadd.s32 %s246, 1
    %s248 = scalar_select %p245, %s246, %s247
    %p251 = pneg %p245
    %p252 = scmp.eq.s32.totalorder %s16, 1
    %p253 = por %p251, %p252
    %p254 = scmp.ne.s32.totalorder %s246, %s249
    %p255 = scmp.eq.s32.totalorder %s16, 0
    %p256 = por %p254, %p255
    %p257 = scmp.ne.s32.totalorder %s246, %s249
    %p258 = scmp.eq.s32.totalorder %s21, 1
    %p259 = por %p257, %p258
    %p260 = scmp.ne.s32.totalorder %s249, %s250
    %p261 = scmp.eq.s32.totalorder %s21, 0
    %p262 = por %p260, %p261
    %p263 = scmp.ne.s32.totalorder %s249, %s250
    %p264 = scmp.eq.s32.totalorder %s22, 1
    %p265 = por %p263, %p264
    %p267 = scmp.ne.s32.totalorder %s250, %s266
    %p268 = scmp.eq.s32.totalorder %s22, 0
    %p269 = por %p267, %p268
    %p270 = scmp.le.s32.totalorder 1, %s16
    %p271 = scmp.lt.s32.totalorder %s16, 3
    %p272 = pnand %p270, %p271
    %p273 = pneg %p272
    // Predicated region
    $region9: #{enetv2_forward.4} parent=5 // pred_check
      _
    $region10: #{enetv2_forward.4} parent=5 // pred_check_branch
      %275 = sbr.rel (%p272) target = $region12
    $region11: #{enetv2_forward.4} parent=5 // pred_region
      %s276 = ssub.s32 %s16, 1
      // Predicated region
      $region13: #{enetv2_forward.4} parent=11 // pred_check
        %p277 = pneg %p89
      $region14: #{enetv2_forward.4} parent=11 // pred_check_branch
        %279 = sbr.rel (%p277) target = $region16
      $region15: #{enetv2_forward.4} parent=11 // pred_region
        _
      $region16: #{enetv2_forward.4} parent=11 // pred_fallthru
        _
      // Predicated region
      $region17: #{enetv2_forward.4} parent=11 // pred_check
        %p280 = pneg %p110
      $region18: #{enetv2_forward.4} parent=11 // pred_check_branch
        %282 = sbr.rel (%p280) target = $region20
      $region19: #{enetv2_forward.4} parent=11 // pred_region
        _
      $region20: #{enetv2_forward.4} parent=11 // pred_fallthru
        _
      // Predicated region
      $region21: #{enetv2_forward.4} parent=11 // pred_check
        %p283 = pneg %p131
      $region22: #{enetv2_forward.4} parent=11 // pred_check_branch
        %285 = sbr.rel (%p283) target = $region24
      $region23: #{enetv2_forward.4} parent=11 // pred_region
        _
      $region24: #{enetv2_forward.4} parent=11 // pred_fallthru
        _
      // Predicated region
      $region25: #{enetv2_forward.4} parent=11 // pred_check
        %p286 = pneg %p152
      $region26: #{enetv2_forward.4} parent=11 // pred_check_branch
        %288 = sbr.rel (%p286) target = $region28
      $region27: #{enetv2_forward.4} parent=11 // pred_region
        _
      $region28: #{enetv2_forward.4} parent=11 // pred_fallthru
        _
      // Predicated region
      $region29: #{enetv2_forward.4} parent=11 // pred_check
        %p289 = pneg %p173
      $region30: #{enetv2_forward.4} parent=11 // pred_check_branch
        %291 = sbr.rel (%p289) target = $region32
      $region31: #{enetv2_forward.4} parent=11 // pred_region
        _
      $region32: #{enetv2_forward.4} parent=11 // pred_fallthru
        _
      // Predicated region
      $region33: #{enetv2_forward.4} parent=11 // pred_check
        %p292 = pneg %p194
      $region34: #{enetv2_forward.4} parent=11 // pred_check_branch
        %294 = sbr.rel (%p292) target = $region36
      $region35: #{enetv2_forward.4} parent=11 // pred_region
        _
      $region36: #{enetv2_forward.4} parent=11 // pred_fallthru
        _
      // Predicated region
      $region37: #{enetv2_forward.4} parent=11 // pred_check
        %p295 = pneg %p215
      $region38: #{enetv2_forward.4} parent=11 // pred_check_branch
        %297 = sbr.rel (%p295) target = $region40
      $region39: #{enetv2_forward.4} parent=11 // pred_region
        _
      $region40: #{enetv2_forward.4} parent=11 // pred_fallthru
        _
      // Predicated region
      $region41: #{enetv2_forward.4} parent=11 // pred_check
        %p298 = pneg %p236
      $region42: #{enetv2_forward.4} parent=11 // pred_check_branch
        %300 = sbr.rel (%p298) target = $region44
      $region43: #{enetv2_forward.4} parent=11 // pred_region
        _
      $region44: #{enetv2_forward.4} parent=11 // pred_fallthru
        _
    $region12: #{enetv2_forward.4} parent=5 // pred_fallthru
      _
    %p301 = scmp.lt.s32.totalorder %s16, 2
    // Predicated region
    $region45: #{enetv2_forward.4} parent=5 // pred_check
      %p302 = pneg %p301
    $region46: #{enetv2_forward.4} parent=5 // pred_check_branch
      %304 = sbr.rel (%p302) target = $region48
    $region47: #{enetv2_forward.4} parent=5 // pred_region
      // Predicated region
      $region49: #{enetv2_forward.4} parent=47 // pred_check
        %p305 = pneg %p36
      $region50: #{enetv2_forward.4} parent=47 // pred_check_branch
        %307 = sbr.rel (%p305) target = $region52
      $region51: #{enetv2_forward.4} parent=47 // pred_region
        %p308 = scmp.lt.s32.totalorder %s16, 1
        %s309 = scalar_select %p308, %s16, 1
        %s310 = smul.addr %s309, 20
        %s311 = smul.addr %s310, 4
        %s312 = scalar_lea.vmem %s0, %s311
      $region52: #{enetv2_forward.4} parent=47 // pred_fallthru
        _
      // Predicated region
      $region53: #{enetv2_forward.4} parent=47 // pred_check
        %p313 = pneg %p62
      $region54: #{enetv2_forward.4} parent=47 // pred_check_branch
        %315 = sbr.rel (%p313) target = $region56
      $region55: #{enetv2_forward.4} parent=47 // pred_region
        %p316 = scmp.lt.s32.totalorder %s16, 1
        %s317 = scalar_select %p316, %s16, 1
        %s318 = smul.addr %s317, 8
        %s319 = smul.addr %s318, 4
        %s320 = scalar_lea.vmem %s1, %s319
      $region56: #{enetv2_forward.4} parent=47 // pred_fallthru
        _
    $region48: #{enetv2_forward.4} parent=5 // pred_fallthru
      _
    %p321 = scmp.le.s32.totalorder 1, %s16
    %p322 = scmp.lt.s32.totalorder %s16, 3
    %p323 = pnand %p321, %p322
    %p324 = pneg %p323
    // Predicated region
    $region57: #{enetv2_forward.4} parent=5 // pred_check
      _
    $region58: #{enetv2_forward.4} parent=5 // pred_check_branch
      %326 = sbr.rel (%p323) target = $region60
    $region59: #{enetv2_forward.4} parent=5 // pred_region
      %s327 = ssub.s32 %s16, 1
      %p328 = scmp.lt.s32.totalorder %s21, 1
      %s329 = scalar_select %p328, %s21, 1
      %s330 = smul.addr %s329, 20
      %s331 = smul.addr %s330, 4
      %s332 = scalar_lea.vmem %s0, %s331
      %p333 = pneg %p42
      %p334 = pneg %p39
      %p335 = scmp.lt.s32.totalorder %s21, 1
      %s336 = scalar_select %p335, %s21, 1
      %s337 = smul.addr %s336, 8
      %s338 = smul.addr %s337, 4
      %s339 = scalar_lea.vmem %s1, %s338
      %p340 = pneg %p68
      %p341 = pneg %p65
      %p342 = pneg %p89
      %p343 = pneg %p86
      %p344 = pneg %p110
      %p345 = pneg %p107
      %p346 = pneg %p131
      %p347 = pneg %p128
      %p348 = pneg %p152
      %p349 = pneg %p149
      %p350 = pneg %p173
      %p351 = pneg %p170
      %p352 = pneg %p194
      %p353 = pneg %p191
      %p354 = pneg %p215
      %p355 = pneg %p212
      %p356 = pneg %p236
      %p357 = pneg %p233
      %p358 = pneg %p262
      %p359 = pneg %p259
      %p360 = scmp.lt.s32.totalorder %s21, 1
      %s361 = scalar_select %p360, %s21, 1
      %s362 = smul.addr %s361, 8
      %s363 = smul.addr %s362, 4
      %s364 = scalar_lea.vmem %s10, %s363
      %p365 = scmp.lt.s32.totalorder %s21, 1
      %s366 = scalar_select %p365, %s21, 1
      %s367 = smul.addr %s366, 20
      %s368 = smul.addr %s367, 4
      %s369 = scalar_lea.vmem %s0, %s368
      %p370 = scmp.lt.s32.totalorder %s21, 1
      %s371 = scalar_select %p370, %s21, 1
      %s372 = smul.addr %s371, 8
      %s373 = smul.addr %s372, 4
      %s374 = scalar_lea.vmem %s1, %s373
      %p375 = scmp.lt.s32.totalorder %s21, 1
      %s376 = scalar_select %p375, %s21, 1
      %s377 = smul.addr %s376, 8
      %s378 = smul.addr %s377, 4
      %s379 = scalar_lea.vmem %s10, %s378
      %v381 = vld [vmem:[%s369] sm:$0xf]
      %v382 = vld [vmem:[%s369 + $0x4] sm:$0x1]
      %v383 = vld [vmem:[%s369 + $0x8] sm:$0xf]
      %v384 = vld [vmem:[%s369 + $0xc] sm:$0x1]
      %v385 = vld [vmem:[%s369 + $0x10] sm:$0xf]
      %v386 = vld [vmem:[%s369 + $0x14] sm:$0x1]
      %v387 = vld [vmem:[%s369 + $0x18] sm:$0xf]
      %v388 = vld [vmem:[%s369 + $0x1c] sm:$0x1]
      %v389 = vld [vmem:[%s369 + $0x20] sm:$0xf]
      %v390 = vld [vmem:[%s369 + $0x24] sm:$0x1]
      %v391 = vld [vmem:[%s369 + $0x28] sm:$0xf]
      %v392 = vld [vmem:[%s369 + $0x2c] sm:$0x1]
      %v393 = vld [vmem:[%s369 + $0x30] sm:$0xf]
      %v394 = vld [vmem:[%s369 + $0x34] sm:$0x1]
      %v395 = vld [vmem:[%s369 + $0x38] sm:$0xf]
      %v396 = vld [vmem:[%s369 + $0x3c] sm:$0x1]
      %v397 = vld [vmem:[%s369 + $0x40] sm:$0xf]
      %v398 = vld [vmem:[%s369 + $0x44] sm:$0x1]
      %v399 = vld [vmem:[%s369 + $0x48] sm:$0xf]
      %v400 = vld [vmem:[%s369 + $0x4c] sm:$0x1]
      %v401 = vunpack.c.l.bf16 %v381
      %v402 = vunpack.c.l.bf16 %v382
      %v403 = vunpack.c.l.bf16 %v383
      %v404 = vunpack.c.l.bf16 %v384
      %v405 = vunpack.c.l.bf16 %v385
      %v406 = vunpack.c.l.bf16 %v386
      %v407 = vunpack.c.l.bf16 %v387
      %v408 = vunpack.c.l.bf16 %v388
      %v409 = vunpack.c.l.bf16 %v389
      %v410 = vunpack.c.l.bf16 %v390
      %v411 = vunpack.c.l.bf16 %v391
      %v412 = vunpack.c.l.bf16 %v392
      %v413 = vunpack.c.l.bf16 %v393
      %v414 = vunpack.c.l.bf16 %v394
      %v415 = vunpack.c.l.bf16 %v395
      %v416 = vunpack.c.l.bf16 %v396
      %v417 = vunpack.c.l.bf16 %v397
      %v418 = vunpack.c.l.bf16 %v398
      %v419 = vunpack.c.l.bf16 %v399
      %v420 = vunpack.c.l.bf16 %v400
      %v421 = vld [vmem:[%s2] sm:$0xff]
      %v422 = vld [vmem:[%s2 + $0x8] sm:$0x1]
      %v423 = vlaneseq
      %v424 = vshrl.u32 %v423, 7
      %v425 = vsub.s32 0, %v424
      %v426 = vrot.slane %v421, %v425
      %v427 = vmul.f32 %v401, %v426
      %v428 = vmul.f32 %v403, %v426
      %v429 = vmul.f32 %v405, %v426
      %v430 = vmul.f32 %v407, %v426
      %v431 = vmul.f32 %v409, %v426
      %v432 = vmul.f32 %v411, %v426
      %v433 = vmul.f32 %v413, %v426
      %v434 = vmul.f32 %v415, %v426
      %v435 = vlaneseq
      %v436 = vshrl.u32 %v435, 7
      %v437 = vsub.s32 1, %v436
      %v438 = vrot.slane %v421, %v437
      %v439 = vmul.f32 %v401, %v438
      %v440 = vmul.f32 %v402, %v438
      %v441 = vmul.f32 %v403, %v438
      %v442 = vmul.f32 %v404, %v438
      %v443 = vmul.f32 %v405, %v438
      %v444 = vmul.f32 %v406, %v438
      %v445 = vmul.f32 %v407, %v438
      %v446 = vmul.f32 %v408, %v438
      %v447 = vmul.f32 %v409, %v438
      %v448 = vmul.f32 %v410, %v438
      %v449 = vmul.f32 %v411, %v438
      %v450 = vmul.f32 %v412, %v438
      %v451 = vmul.f32 %v413, %v438
      %v452 = vmul.f32 %v414, %v438
      %v453 = vmul.f32 %v415, %v438
      %v454 = vmul.f32 %v416, %v438
      %vm471 = vcmask 1046528
      %v472 = vrot.slane %v439, 1
      %v473 = vrot.slane %v440, 1
      %v474 = vsel %vm471, %v472, %v473
      %v475 = vrot.slane %v441, 1
      %v476 = vrot.slane %v442, 1
      %v477 = vsel %vm471, %v475, %v476
      %v478 = vrot.slane %v443, 1
      %v479 = vrot.slane %v444, 1
      %v480 = vsel %vm471, %v478, %v479
      %v481 = vrot.slane %v445, 1
      %v482 = vrot.slane %v446, 1
      %v483 = vsel %vm471, %v481, %v482
      %v484 = vrot.slane %v447, 1
      %v485 = vrot.slane %v448, 1
      %v486 = vsel %vm471, %v484, %v485
      %v487 = vrot.slane %v449, 1
      %v488 = vrot.slane %v450, 1
      %v489 = vsel %vm471, %v487, %v488
      %v490 = vrot.slane %v451, 1
      %v491 = vrot.slane %v452, 1
      %v492 = vsel %vm471, %v490, %v491
      %v493 = vrot.slane %v453, 1
      %v494 = vrot.slane %v454, 1
      %v495 = vsel %vm471, %v493, %v494
      %v504 = vadd.f32 %v427, %v474
      %v505 = vadd.f32 %v428, %v477
      %v506 = vadd.f32 %v429, %v480
      %v507 = vadd.f32 %v430, %v483
      %v508 = vadd.f32 %v431, %v486
      %v509 = vadd.f32 %v432, %v489
      %v510 = vadd.f32 %v433, %v492
      %v511 = vadd.f32 %v434, %v495
      %v512 = vlaneseq
      %v513 = vshrl.u32 %v512, 7
      %v514 = vsub.s32 2, %v513
      %v515 = vrot.slane %v421, %v514
      %v516 = vmul.f32 %v401, %v515
      %v517 = vmul.f32 %v402, %v515
      %v518 = vmul.f32 %v403, %v515
      %v519 = vmul.f32 %v404, %v515
      %v520 = vmul.f32 %v405, %v515
      %v521 = vmul.f32 %v406, %v515
      %v522 = vmul.f32 %v407, %v515
      %v523 = vmul.f32 %v408, %v515
      %v524 = vmul.f32 %v409, %v515
      %v525 = vmul.f32 %v410, %v515
      %v526 = vmul.f32 %v411, %v515
      %v527 = vmul.f32 %v412, %v515
      %v528 = vmul.f32 %v413, %v515
      %v529 = vmul.f32 %v414, %v515
      %v530 = vmul.f32 %v415, %v515
      %v531 = vmul.f32 %v416, %v515
      %vm548 = vcmask 1045504
      %v549 = vrot.slane %v516, 2
      %v550 = vrot.slane %v517, 2
      %v551 = vsel %vm548, %v549, %v550
      %v552 = vrot.slane %v518, 2
      %v553 = vrot.slane %v519, 2
      %v554 = vsel %vm548, %v552, %v553
      %v555 = vrot.slane %v520, 2
      %v556 = vrot.slane %v521, 2
      %v557 = vsel %vm548, %v555, %v556
      %v558 = vrot.slane %v522, 2
      %v559 = vrot.slane %v523, 2
      %v560 = vsel %vm548, %v558, %v559
      %v561 = vrot.slane %v524, 2
      %v562 = vrot.slane %v525, 2
      %v563 = vsel %vm548, %v561, %v562
      %v564 = vrot.slane %v526, 2
      %v565 = vrot.slane %v527, 2
      %v566 = vsel %vm548, %v564, %v565
      %v567 = vrot.slane %v528, 2
      %v568 = vrot.slane %v529, 2
      %v569 = vsel %vm548, %v567, %v568
      %v570 = vrot.slane %v530, 2
      %v571 = vrot.slane %v531, 2
      %v572 = vsel %vm548, %v570, %v571
      %v581 = vadd.f32 %v504, %v551
      %v582 = vadd.f32 %v505, %v554
      %v583 = vadd.f32 %v506, %v557
      %v584 = vadd.f32 %v507, %v560
      %v585 = vadd.f32 %v508, %v563
      %v586 = vadd.f32 %v509, %v566
      %v587 = vadd.f32 %v510, %v569
      %v588 = vadd.f32 %v511, %v572
      %v589 = vlaneseq
      %v590 = vshrl.u32 %v589, 7
      %v591 = vsub.s32 3, %v590
      %v592 = vrot.slane %v421, %v591
      %v593 = vmul.f32 %v403, %v592
      %v594 = vmul.f32 %v405, %v592
      %v595 = vmul.f32 %v407, %v592
      %v596 = vmul.f32 %v409, %v592
      %v597 = vmul.f32 %v411, %v592
      %v598 = vmul.f32 %v413, %v592
      %v599 = vmul.f32 %v415, %v592
      %v600 = vmul.f32 %v417, %v592
      %v601 = vadd.f32 %v581, %v593
      %v602 = vadd.f32 %v582, %v594
      %v603 = vadd.f32 %v583, %v595
      %v604 = vadd.f32 %v584, %v596
      %v605 = vadd.f32 %v585, %v597
      %v606 = vadd.f32 %v586, %v598
      %v607 = vadd.f32 %v587, %v599
      %v608 = vadd.f32 %v588, %v600
      %v609 = vlaneseq
      %v610 = vshrl.u32 %v609, 7
      %v611 = vsub.s32 4, %v610
      %v612 = vrot.slane %v421, %v611
      %v613 = vmul.f32 %v403, %v612
      %v614 = vmul.f32 %v404, %v612
      %v615 = vmul.f32 %v405, %v612
      %v616 = vmul.f32 %v406, %v612
      %v617 = vmul.f32 %v407, %v612
      %v618 = vmul.f32 %v408, %v612
      %v619 = vmul.f32 %v409, %v612
      %v620 = vmul.f32 %v410, %v612
      %v621 = vmul.f32 %v411, %v612
      %v622 = vmul.f32 %v412, %v612
      %v623 = vmul.f32 %v413, %v612
      %v624 = vmul.f32 %v414, %v612
      %v625 = vmul.f32 %v415, %v612
      %v626 = vmul.f32 %v416, %v612
      %v627 = vmul.f32 %v417, %v612
      %v628 = vmul.f32 %v418, %v612
      %v645 = vrot.slane %v613, 1
      %v646 = vrot.slane %v614, 1
      %v647 = vsel %vm471, %v645, %v646
      %v648 = vrot.slane %v615, 1
      %v649 = vrot.slane %v616, 1
      %v650 = vsel %vm471, %v648, %v649
      %v651 = vrot.slane %v617, 1
      %v652 = vrot.slane %v618, 1
      %v653 = vsel %vm471, %v651, %v652
      %v654 = vrot.slane %v619, 1
      %v655 = vrot.slane %v620, 1
      %v656 = vsel %vm471, %v654, %v655
      %v657 = vrot.slane %v621, 1
      %v658 = vrot.slane %v622, 1
      %v659 = vsel %vm471, %v657, %v658
      %v660 = vrot.slane %v623, 1
      %v661 = vrot.slane %v624, 1
      %v662 = vsel %vm471, %v660, %v661
      %v663 = vrot.slane %v625, 1
      %v664 = vrot.slane %v626, 1
      %v665 = vsel %vm471, %v663, %v664
      %v666 = vrot.slane %v627, 1
      %v667 = vrot.slane %v628, 1
      %v668 = vsel %vm471, %v666, %v667
      %v677 = vadd.f32 %v601, %v647
      %v678 = vadd.f32 %v602, %v650
      %v679 = vadd.f32 %v603, %v653
      %v680 = vadd.f32 %v604, %v656
      %v681 = vadd.f32 %v605, %v659
      %v682 = vadd.f32 %v606, %v662
      %v683 = vadd.f32 %v607, %v665
      %v684 = vadd.f32 %v608, %v668
      %v685 = vlaneseq
      %v686 = vshrl.u32 %v685, 7
      %v687 = vsub.s32 5, %v686
      %v688 = vrot.slane %v421, %v687
      %v689 = vmul.f32 %v403, %v688
      %v690 = vmul.f32 %v404, %v688
      %v691 = vmul.f32 %v405, %v688
      %v692 = vmul.f32 %v406, %v688
      %v693 = vmul.f32 %v407, %v688
      %v694 = vmul.f32 %v408, %v688
      %v695 = vmul.f32 %v409, %v688
      %v696 = vmul.f32 %v410, %v688
      %v697 = vmul.f32 %v411, %v688
      %v698 = vmul.f32 %v412, %v688
      %v699 = vmul.f32 %v413, %v688
      %v700 = vmul.f32 %v414, %v688
      %v701 = vmul.f32 %v415, %v688
      %v702 = vmul.f32 %v416, %v688
      %v703 = vmul.f32 %v417, %v688
      %v704 = vmul.f32 %v418, %v688
      %v721 = vrot.slane %v689, 2
      %v722 = vrot.slane %v690, 2
      %v723 = vsel %vm548, %v721, %v722
      %v724 = vrot.slane %v691, 2
      %v725 = vrot.slane %v692, 2
      %v726 = vsel %vm548, %v724, %v725
      %v727 = vrot.slane %v693, 2
      %v728 = vrot.slane %v694, 2
      %v729 = vsel %vm548, %v727, %v728
      %v730 = vrot.slane %v695, 2
      %v731 = vrot.slane %v696, 2
      %v732 = vsel %vm548, %v730, %v731
      %v733 = vrot.slane %v697, 2
      %v734 = vrot.slane %v698, 2
      %v735 = vsel %vm548, %v733, %v734
      %v736 = vrot.slane %v699, 2
      %v737 = vrot.slane %v700, 2
      %v738 = vsel %vm548, %v736, %v737
      %v739 = vrot.slane %v701, 2
      %v740 = vrot.slane %v702, 2
      %v741 = vsel %vm548, %v739, %v740
      %v742 = vrot.slane %v703, 2
      %v743 = vrot.slane %v704, 2
      %v744 = vsel %vm548, %v742, %v743
      %v753 = vadd.f32 %v677, %v723
      %v754 = vadd.f32 %v678, %v726
      %v755 = vadd.f32 %v679, %v729
      %v756 = vadd.f32 %v680, %v732
      %v757 = vadd.f32 %v681, %v735
      %v758 = vadd.f32 %v682, %v738
      %v759 = vadd.f32 %v683, %v741
      %v760 = vadd.f32 %v684, %v744
      %v761 = vlaneseq
      %v762 = vshrl.u32 %v761, 7
      %v763 = vsub.s32 6, %v762
      %v764 = vrot.slane %v421, %v763
      %v765 = vmul.f32 %v405, %v764
      %v766 = vmul.f32 %v407, %v764
      %v767 = vmul.f32 %v409, %v764
      %v768 = vmul.f32 %v411, %v764
      %v769 = vmul.f32 %v413, %v764
      %v770 = vmul.f32 %v415, %v764
      %v771 = vmul.f32 %v417, %v764
      %v772 = vmul.f32 %v419, %v764
      %v773 = vadd.f32 %v753, %v765
      %v774 = vadd.f32 %v754, %v766
      %v775 = vadd.f32 %v755, %v767
      %v776 = vadd.f32 %v756, %v768
      %v777 = vadd.f32 %v757, %v769
      %v778 = vadd.f32 %v758, %v770
      %v779 = vadd.f32 %v759, %v771
      %v780 = vadd.f32 %v760, %v772
      %v781 = vlaneseq
      %v782 = vshrl.u32 %v781, 7
      %v783 = vsub.s32 7, %v782
      %v784 = vrot.slane %v421, %v783
      %v785 = vmul.f32 %v405, %v784
      %v786 = vmul.f32 %v406, %v784
      %v787 = vmul.f32 %v407, %v784
      %v788 = vmul.f32 %v408, %v784
      %v789 = vmul.f32 %v409, %v784
      %v790 = vmul.f32 %v410, %v784
      %v791 = vmul.f32 %v411, %v784
      %v792 = vmul.f32 %v412, %v784
      %v793 = vmul.f32 %v413, %v784
      %v794 = vmul.f32 %v414, %v784
      %v795 = vmul.f32 %v415, %v784
      %v796 = vmul.f32 %v416, %v784
      %v797 = vmul.f32 %v417, %v784
      %v798 = vmul.f32 %v418, %v784
      %v799 = vmul.f32 %v419, %v784
      %v800 = vmul.f32 %v420, %v784
      %v817 = vrot.slane %v785, 1
      %v818 = vrot.slane %v786, 1
      %v819 = vsel %vm471, %v817, %v818
      %v820 = vrot.slane %v787, 1
      %v821 = vrot.slane %v788, 1
      %v822 = vsel %vm471, %v820, %v821
      %v823 = vrot.slane %v789, 1
      %v824 = vrot.slane %v790, 1
      %v825 = vsel %vm471, %v823, %v824
      %v826 = vrot.slane %v791, 1
      %v827 = vrot.slane %v792, 1
      %v828 = vsel %vm471, %v826, %v827
      %v829 = vrot.slane %v793, 1
      %v830 = vrot.slane %v794, 1
      %v831 = vsel %vm471, %v829, %v830
      %v832 = vrot.slane %v795, 1
      %v833 = vrot.slane %v796, 1
      %v834 = vsel %vm471, %v832, %v833
      %v835 = vrot.slane %v797, 1
      %v836 = vrot.slane %v798, 1
      %v837 = vsel %vm471, %v835, %v836
      %v838 = vrot.slane %v799, 1
      %v839 = vrot.slane %v800, 1
      %v840 = vsel %vm471, %v838, %v839
      %v849 = vadd.f32 %v773, %v819
      %v850 = vadd.f32 %v774, %v822
      %v851 = vadd.f32 %v775, %v825
      %v852 = vadd.f32 %v776, %v828
      %v853 = vadd.f32 %v777, %v831
      %v854 = vadd.f32 %v778, %v834
      %v855 = vadd.f32 %v779, %v837
      %v856 = vadd.f32 %v780, %v840
      %v857 = vlaneseq
      %v858 = vshrl.u32 %v857, 7
      %v859 = vsub.s32 0, %v858
      %v860 = vrot.slane %v422, %v859
      %v861 = vmul.f32 %v405, %v860
      %v862 = vmul.f32 %v406, %v860
      %v863 = vmul.f32 %v407, %v860
      %v864 = vmul.f32 %v408, %v860
      %v865 = vmul.f32 %v409, %v860
      %v866 = vmul.f32 %v410, %v860
      %v867 = vmul.f32 %v411, %v860
      %v868 = vmul.f32 %v412, %v860
      %v869 = vmul.f32 %v413, %v860
      %v870 = vmul.f32 %v414, %v860
      %v871 = vmul.f32 %v415, %v860
      %v872 = vmul.f32 %v416, %v860
      %v873 = vmul.f32 %v417, %v860
      %v874 = vmul.f32 %v418, %v860
      %v875 = vmul.f32 %v419, %v860
      %v876 = vmul.f32 %v420, %v860
      %v893 = vrot.slane %v861, 2
      %v894 = vrot.slane %v862, 2
      %v895 = vsel %vm548, %v893, %v894
      %v896 = vrot.slane %v863, 2
      %v897 = vrot.slane %v864, 2
      %v898 = vsel %vm548, %v896, %v897
      %v899 = vrot.slane %v865, 2
      %v900 = vrot.slane %v866, 2
      %v901 = vsel %vm548, %v899, %v900
      %v902 = vrot.slane %v867, 2
      %v903 = vrot.slane %v868, 2
      %v904 = vsel %vm548, %v902, %v903
      %v905 = vrot.slane %v869, 2
      %v906 = vrot.slane %v870, 2
      %v907 = vsel %vm548, %v905, %v906
      %v908 = vrot.slane %v871, 2
      %v909 = vrot.slane %v872, 2
      %v910 = vsel %vm548, %v908, %v909
      %v911 = vrot.slane %v873, 2
      %v912 = vrot.slane %v874, 2
      %v913 = vsel %vm548, %v911, %v912
      %v914 = vrot.slane %v875, 2
      %v915 = vrot.slane %v876, 2
      %v916 = vsel %vm548, %v914, %v915
      %v925 = vadd.f32 %v849, %v895
      %v926 = vadd.f32 %v850, %v898
      %v927 = vadd.f32 %v851, %v901
      %v928 = vadd.f32 %v852, %v904
      %v929 = vadd.f32 %v853, %v907
      %v930 = vadd.f32 %v854, %v910
      %v931 = vadd.f32 %v855, %v913
      %v932 = vadd.f32 %v856, %v916
      %v933 = vld [vmem:[%s3] sm:$0x1]
      %v935 = vlaneseq
      %v936 = vshrl.u32 %v935, 7
      %v937 = vsub.s32 0, %v936
      %v938 = vrot.slane %v933, %v937
      %v940 = vadd.f32 %v925, %v938
      %v941 = vadd.f32 %v926, %v938
      %v942 = vadd.f32 %v927, %v938
      %v943 = vadd.f32 %v928, %v938
      %v944 = vadd.f32 %v929, %v938
      %v945 = vadd.f32 %v930, %v938
      %v946 = vadd.f32 %v931, %v938
      %v947 = vadd.f32 %v932, %v938
      %v948 = vxor.u32 %v940, 2147483648
      %v949 = vxor.u32 %v941, 2147483648
      %v950 = vxor.u32 %v942, 2147483648
      %v951 = vxor.u32 %v943, 2147483648
      %v952 = vxor.u32 %v944, 2147483648
      %v953 = vxor.u32 %v945, 2147483648
      %v954 = vxor.u32 %v946, 2147483648
      %v955 = vxor.u32 %v947, 2147483648
      %v956 = vmul.f32 %v948, 1.442695
      %v957 = vpow.pop %v956
      %v958 = vmul.f32 %v949, 1.442695
      %v959 = vpow.pop %v958
      %v960 = vmul.f32 %v950, 1.442695
      %v961 = vpow.pop %v960
      %v962 = vmul.f32 %v951, 1.442695
      %v963 = vpow.pop %v962
      %v964 = vmul.f32 %v952, 1.442695
      %v965 = vpow.pop %v964
      %v966 = vmul.f32 %v953, 1.442695
      %v967 = vpow.pop %v966
      %v968 = vmul.f32 %v954, 1.442695
      %v969 = vpow.pop %v968
      %v970 = vmul.f32 %v955, 1.442695
      %v971 = vpow.pop %v970
      %v972 = vadd.f32 %v957, 1.0
      %v973 = vadd.f32 %v959, 1.0
      %v974 = vadd.f32 %v961, 1.0
      %v975 = vadd.f32 %v963, 1.0
      %v976 = vadd.f32 %v965, 1.0
      %v977 = vadd.f32 %v967, 1.0
      %v978 = vadd.f32 %v969, 1.0
      %v979 = vadd.f32 %v971, 1.0
      %v980 = vrcp.pop %v972
      %v981 = vmul.f32 1.0, %v980
      %v982 = vrcp.pop %v973
      %v983 = vmul.f32 1.0, %v982
      %v984 = vrcp.pop %v974
      %v985 = vmul.f32 1.0, %v984
      %v986 = vrcp.pop %v975
      %v987 = vmul.f32 1.0, %v986
      %v988 = vrcp.pop %v976
      %v989 = vmul.f32 1.0, %v988
      %v990 = vrcp.pop %v977
      %v991 = vmul.f32 1.0, %v990
      %v992 = vrcp.pop %v978
      %v993 = vmul.f32 1.0, %v992
      %v994 = vrcp.pop %v979
      %v995 = vmul.f32 1.0, %v994
      %v996 = vmul.f32 %v940, %v981
      %v997 = vmul.f32 %v941, %v983
      %v998 = vmul.f32 %v942, %v985
      %v999 = vmul.f32 %v943, %v987
      %v1000 = vmul.f32 %v944, %v989
      %v1001 = vmul.f32 %v945, %v991
      %v1002 = vmul.f32 %v946, %v993
      %v1003 = vmul.f32 %v947, %v995
      %v1004 = vadd.f32 %v996, %v997
      %v1005 = vadd.f32 %v1004, %v998
      %v1006 = vadd.f32 %v1005, %v999
      %v1007 = vadd.f32 %v1006, %v1000
      %v1008 = vadd.f32 %v1007, %v1001
      %v1009 = vadd.f32 %v1008, %v1002
      %v1010 = vadd.f32 %v1009, %v1003
      %v1011 = vrot.slane %v1010, 4
      %v1012 = vadd.f32 %v1010, %v1011
      %v1013 = vrot.slane %v1012, 2
      %v1014 = vadd.f32 %v1012, %v1013
      %v1015 = vrot.slane %v1014, 1
      %v1016 = vadd.f32 %v1014, %v1015
      %v1017 = vrcp.pop 64.0
      %v1018 = vmul.f32 %v1016, %v1017
      %v1019 = vpack.c.bf16 %v1018, %v1018
      %v1020 = vld [vmem:[%s4] sm:$0xf]
      %v1021 = vld [vmem:[%s4 + $0x4] sm:$0xf]
      %v1022 = vld [vmem:[%s4 + $0x8] sm:$0xf]
      %v1023 = vld [vmem:[%s4 + $0xc] sm:$0xf]
      %v1024 = vld [vmem:[%s4 + $0x10] sm:$0xf]
      %v1025 = vld [vmem:[%s4 + $0x14] sm:$0xf]
      %v1026 = vld [vmem:[%s4 + $0x18] sm:$0xf]
      %v1027 = vld [vmem:[%s4 + $0x1c] sm:$0xf]
      %v1028 = vld [vmem:[%s4 + $0x20] sm:$0xf]
      %v1029 = vld [vmem:[%s4 + $0x24] sm:$0xf]
      %v1030 = vld [vmem:[%s4 + $0x28] sm:$0xf]
      %v1031 = vld [vmem:[%s4 + $0x2c] sm:$0xf]
      %v1032 = vld [vmem:[%s4 + $0x30] sm:$0xf]
      %v1033 = vld [vmem:[%s4 + $0x34] sm:$0xf]
      %v1034 = vld [vmem:[%s4 + $0x38] sm:$0xf]
      %v1035 = vld [vmem:[%s4 + $0x3c] sm:$0xf]
      %v1036 = vld [vmem:[%s5] sm:$0x1]
      %v1053 = vunpack.c.l.b16 %v1020
      %v1054 = vunpack.c.l.b16 %v1021
      %v1055 = vunpack.c.l.b16 %v1022
      %v1056 = vunpack.c.l.b16 %v1023
      %v1057 = vunpack.c.l.b16 %v1024
      %v1058 = vunpack.c.l.b16 %v1025
      %v1059 = vunpack.c.l.b16 %v1026
      %v1060 = vunpack.c.l.b16 %v1027
      %v1061 = vunpack.c.l.b16 %v1028
      %v1062 = vunpack.c.l.b16 %v1029
      %v1063 = vunpack.c.l.b16 %v1030
      %v1064 = vunpack.c.l.b16 %v1031
      %v1065 = vunpack.c.l.b16 %v1032
      %v1066 = vunpack.c.l.b16 %v1033
      %v1067 = vunpack.c.l.b16 %v1034
      %v1068 = vunpack.c.l.b16 %v1035
      %v1069 = vpack.c.b16 %v1054, %v1053
      %v1070 = vpack.c.b16 %v1056, %v1055
      %v1071 = vpack.c.b16 %v1058, %v1057
      %v1072 = vpack.c.b16 %v1060, %v1059
      %v1073 = vpack.c.b16 %v1062, %v1061
      %v1074 = vpack.c.b16 %v1064, %v1063
      %v1075 = vpack.c.b16 %v1066, %v1065
      %v1076 = vpack.c.b16 %v1068, %v1067
      %1085 = vmatprep.subr.bf16.mxu0 0
      %1086 = vmatpush1.bf16.msra.mxu0 %v1069
      %1087 = vmatprep.subr.bf16.mxu0 0
      %1088 = vmatpush1.bf16.msra.mxu0 %v1070
      %1089 = vmatprep.subr.bf16.mxu0 0
      %1090 = vmatpush1.bf16.msra.mxu0 %v1071
      %1091 = vmatprep.subr.bf16.mxu0 0
      %1092 = vmatpush1.bf16.msra.mxu0 %v1072
      %1093 = vmatprep.subr.bf16.mxu0 0
      %1094 = vmatpush1.bf16.msra.mxu0 %v1073
      %1095 = vmatprep.subr.bf16.mxu0 0
      %1096 = vmatpush1.bf16.msra.mxu0 %v1074
      %1097 = vmatprep.subr.bf16.mxu0 0
      %1098 = vmatpush1.bf16.msra.mxu0 %v1075
      %1099 = vmatprep.subr.bf16.mxu0 0
      %1100 = vmatpush1.bf16.msra.mxu0 %v1076
      %1101 = vmatprep.subr.bf16.mxu0 0
      %1102 = vmatpush1.bf16.msra.mxu0 0
      %1103 = vmatprep.subr.bf16.mxu0 0
      %1104 = vmatpush1.bf16.msra.mxu0 0
      %1105 = vmatprep.subr.bf16.mxu0 0
      %1106 = vmatpush1.bf16.msra.mxu0 0
      %1107 = vmatprep.subr.bf16.mxu0 0
      %1108 = vmatpush1.bf16.msra.mxu0 0
      %1109 = vmatprep.subr.bf16.mxu0 0
      %1110 = vmatpush1.bf16.msra.mxu0 0
      %1111 = vmatprep.subr.bf16.mxu0 0
      %1112 = vmatpush1.bf16.msra.mxu0 0
      %1113 = vmatprep.subr.bf16.mxu0 0
      %1114 = vmatpush1.bf16.msra.mxu0 0
      %1115 = vmatprep.subr.bf16.mxu0 0
      %1116 = vmatpush1.bf16.msra.mxu0 0
      %1117 = vmatprep.mubr.bf16.mxu0 0
      %1118 = vmatmul.mubr.bf16.gmra.mrb[0].mxu0 %v1019
      %v1119 = vpop.f32.mrb[0].mxu0
      %v1120 = vadd.f32 %v1036, %v1119
      %v1121 = vpop.f32.mrb[0].mxu0
      %v1122 = vpop.f32.mrb[0].mxu0
      %v1123 = vpop.f32.mrb[0].mxu0
      %1124 = vdwg.mxu0
      %v1125 = vxor.u32 %v1120, 2147483648
      %v1126 = vmul.f32 %v1125, 1.442695
      %v1127 = vpow.pop %v1126
      %v1128 = vadd.f32 %v1127, 1.0
      %v1129 = vrcp.pop %v1128
      %v1130 = vmul.f32 1.0, %v1129
      %v1131 = vmul.f32 %v1120, %v1130
      %v1132 = vpack.c.bf16 %v1131, %v1131
      %v1133 = vld [vmem:[%s6] sm:$0xf]
      %v1134 = vld [vmem:[%s6 + $0x4] sm:$0xf]
      %v1135 = vld [vmem:[%s6 + $0x8] sm:$0xf]
      %v1136 = vld [vmem:[%s6 + $0xc] sm:$0xf]
      %v1137 = vld [vmem:[%s6 + $0x10] sm:$0xf]
      %v1138 = vld [vmem:[%s6 + $0x14] sm:$0xf]
      %v1139 = vld [vmem:[%s6 + $0x18] sm:$0xf]
      %v1140 = vld [vmem:[%s6 + $0x1c] sm:$0xf]
      %v1141 = vld [vmem:[%s6 + $0x20] sm:$0xf]
      %v1142 = vld [vmem:[%s6 + $0x24] sm:$0xf]
      %v1143 = vld [vmem:[%s6 + $0x28] sm:$0xf]
      %v1144 = vld [vmem:[%s6 + $0x2c] sm:$0xf]
      %v1145 = vld [vmem:[%s6 + $0x30] sm:$0xf]
      %v1146 = vld [vmem:[%s6 + $0x34] sm:$0xf]
      %v1147 = vld [vmem:[%s6 + $0x38] sm:$0xf]
      %v1148 = vld [vmem:[%s6 + $0x3c] sm:$0xf]
      %v1149 = vld [vmem:[%s7] sm:$0x1]
      %v1166 = vunpack.c.l.b16 %v1133
      %v1167 = vunpack.c.l.b16 %v1134
      %v1168 = vunpack.c.l.b16 %v1135
      %v1169 = vunpack.c.l.b16 %v1136
      %v1170 = vunpack.c.l.b16 %v1137
      %v1171 = vunpack.c.l.b16 %v1138
      %v1172 = vunpack.c.l.b16 %v1139
      %v1173 = vunpack.c.l.b16 %v1140
      %v1174 = vunpack.c.l.b16 %v1141
      %v1175 = vunpack.c.l.b16 %v1142
      %v1176 = vunpack.c.l.b16 %v1143
      %v1177 = vunpack.c.l.b16 %v1144
      %v1178 = vunpack.c.l.b16 %v1145
      %v1179 = vunpack.c.l.b16 %v1146
      %v1180 = vunpack.c.l.b16 %v1147
      %v1181 = vunpack.c.l.b16 %v1148
      %v1182 = vpack.c.b16 %v1167, %v1166
      %v1183 = vpack.c.b16 %v1169, %v1168
      %v1184 = vpack.c.b16 %v1171, %v1170
      %v1185 = vpack.c.b16 %v1173, %v1172
      %v1186 = vpack.c.b16 %v1175, %v1174
      %v1187 = vpack.c.b16 %v1177, %v1176
      %v1188 = vpack.c.b16 %v1179, %v1178
      %v1189 = vpack.c.b16 %v1181, %v1180
      %1198 = vmatprep.subr.bf16.mxu0 0
      %1199 = vmatpush1.bf16.msra.mxu0 %v1182
      %1200 = vmatprep.subr.bf16.mxu0 0
      %1201 = vmatpush1.bf16.msra.mxu0 %v1183
      %1202 = vmatprep.subr.bf16.mxu0 0
      %1203 = vmatpush1.bf16.msra.mxu0 %v1184
      %1204 = vmatprep.subr.bf16.mxu0 0
      %1205 = vmatpush1.bf16.msra.mxu0 %v1185
      %1206 = vmatprep.subr.bf16.mxu0 0
      %1207 = vmatpush1.bf16.msra.mxu0 %v1186
      %1208 = vmatprep.subr.bf16.mxu0 0
      %1209 = vmatpush1.bf16.msra.mxu0 %v1187
      %1210 = vmatprep.subr.bf16.mxu0 0
      %1211 = vmatpush1.bf16.msra.mxu0 %v1188
      %1212 = vmatprep.subr.bf16.mxu0 0
      %1213 = vmatpush1.bf16.msra.mxu0 %v1189
      %1214 = vmatprep.subr.bf16.mxu0 0
      %1215 = vmatpush1.bf16.msra.mxu0 0
      %1216 = vmatprep.subr.bf16.mxu0 0
      %1217 = vmatpush1.bf16.msra.mxu0 0
      %1218 = vmatprep.subr.bf16.mxu0 0
      %1219 = vmatpush1.bf16.msra.mxu0 0
      %1220 = vmatprep.subr.bf16.mxu0 0
      %1221 = vmatpush1.bf16.msra.mxu0 0
      %1222 = vmatprep.subr.bf16.mxu0 0
      %1223 = vmatpush1.bf16.msra.mxu0 0
      %1224 = vmatprep.subr.bf16.mxu0 0
      %1225 = vmatpush1.bf16.msra.mxu0 0
      %1226 = vmatprep.subr.bf16.mxu0 0
      %1227 = vmatpush1.bf16.msra.mxu0 0
      %1228 = vmatprep.subr.bf16.mxu0 0
      %1229 = vmatpush1.bf16.msra.mxu0 0
      %1230 = vmatprep.mubr.bf16.mxu0 0
      %1231 = vmatmul.mubr.bf16.gmra.mrb[0].mxu0 %v1132
      %v1232 = vpop.f32.mrb[0].mxu0
      %v1233 = vadd.f32 %v1149, %v1232
      %v1234 = vpop.f32.mrb[0].mxu0
      %v1235 = vpop.f32.mrb[0].mxu0
      %v1236 = vpop.f32.mrb[0].mxu0
      %1237 = vdwg.mxu0
      %v1238 = vxor.u32 %v1233, 2147483648
      %v1239 = vmul.f32 %v1238, 1.442695
      %v1240 = vpow.pop %v1239
      %v1241 = vadd.f32 %v1240, 1.0
      %v1242 = vrcp.pop %v1241
      %v1243 = vmul.f32 1.0, %v1242
      %v1244 = vlaneseq
      %v1245 = vshrl.u32 %v1244, 7
      %v1246 = vsub.s32 0, %v1245
      %v1247 = vrot.slane %v1243, %v1246
      %v1248 = vmul.f32 %v996, %v1247
      %v1249 = vmul.f32 %v997, %v1247
      %v1250 = vmul.f32 %v998, %v1247
      %v1251 = vmul.f32 %v999, %v1247
      %v1252 = vmul.f32 %v1000, %v1247
      %v1253 = vmul.f32 %v1001, %v1247
      %v1254 = vmul.f32 %v1002, %v1247
      %v1255 = vmul.f32 %v1003, %v1247
      %v1256 = vpack.c.bf16 %v1249, %v1248
      %v1257 = vpack.c.bf16 %v1251, %v1250
      %v1258 = vpack.c.bf16 %v1253, %v1252
      %v1259 = vpack.c.bf16 %v1255, %v1254
      %v1260 = vld [vmem:[%s8] sm:$0xf]
      %v1261 = vld [vmem:[%s8 + $0x4] sm:$0xf]
      %v1262 = vld [vmem:[%s8 + $0x8] sm:$0xf]
      %v1263 = vld [vmem:[%s8 + $0xc] sm:$0xf]
      %v1264 = vld [vmem:[%s8 + $0x10] sm:$0xf]
      %v1265 = vld [vmem:[%s8 + $0x14] sm:$0xf]
      %v1266 = vld [vmem:[%s8 + $0x18] sm:$0xf]
      %v1267 = vld [vmem:[%s8 + $0x1c] sm:$0xf]
      %v1268 = vld [vmem:[%s8 + $0x20] sm:$0xf]
      %v1269 = vld [vmem:[%s8 + $0x24] sm:$0xf]
      %v1270 = vld [vmem:[%s8 + $0x28] sm:$0xf]
      %v1271 = vld [vmem:[%s8 + $0x2c] sm:$0xf]
      %v1272 = vld [vmem:[%s8 + $0x30] sm:$0xf]
      %v1273 = vld [vmem:[%s8 + $0x34] sm:$0xf]
      %v1274 = vld [vmem:[%s8 + $0x38] sm:$0xf]
      %v1275 = vld [vmem:[%s8 + $0x3c] sm:$0xf]
      %v1276 = vld [vmem:[%s9] sm:$0x1]
      %v1278 = vlaneseq
      %v1279 = vshrl.u32 %v1278, 7
      %v1280 = vsub.s32 0, %v1279
      %v1281 = vrot.slane %v1276, %v1280
      %v1299 = vunpack.c.l.b16 %v1260
      %v1300 = vunpack.c.l.b16 %v1261
      %v1301 = vunpack.c.l.b16 %v1262
      %v1302 = vunpack.c.l.b16 %v1263
      %v1303 = vunpack.c.l.b16 %v1264
      %v1304 = vunpack.c.l.b16 %v1265
      %v1305 = vunpack.c.l.b16 %v1266
      %v1306 = vunpack.c.l.b16 %v1267
      %v1307 = vunpack.c.l.b16 %v1268
      %v1308 = vunpack.c.l.b16 %v1269
      %v1309 = vunpack.c.l.b16 %v1270
      %v1310 = vunpack.c.l.b16 %v1271
      %v1311 = vunpack.c.l.b16 %v1272
      %v1312 = vunpack.c.l.b16 %v1273
      %v1313 = vunpack.c.l.b16 %v1274
      %v1314 = vunpack.c.l.b16 %v1275
      %v1315 = vpack.c.b16 %v1300, %v1299
      %v1316 = vpack.c.b16 %v1302, %v1301
      %v1317 = vpack.c.b16 %v1304, %v1303
      %v1318 = vpack.c.b16 %v1306, %v1305
      %v1319 = vpack.c.b16 %v1308, %v1307
      %v1320 = vpack.c.b16 %v1310, %v1309
      %v1321 = vpack.c.b16 %v1312, %v1311
      %v1322 = vpack.c.b16 %v1314, %v1313
      %1331 = vmatprep.subr.bf16.mxu0 0
      %1332 = vmatpush1.bf16.msra.mxu0 %v1315
      %1333 = vmatprep.subr.bf16.mxu0 0
      %1334 = vmatpush1.bf16.msra.mxu0 %v1316
      %1335 = vmatprep.subr.bf16.mxu0 0
      %1336 = vmatpush1.bf16.msra.mxu0 %v1317
      %1337 = vmatprep.subr.bf16.mxu0 0
      %1338 = vmatpush1.bf16.msra.mxu0 %v1318
      %1339 = vmatprep.subr.bf16.mxu0 0
      %1340 = vmatpush1.bf16.msra.mxu0 %v1319
      %1341 = vmatprep.subr.bf16.mxu0 0
      %1342 = vmatpush1.bf16.msra.mxu0 %v1320
      %1343 = vmatprep.subr.bf16.mxu0 0
      %1344 = vmatpush1.bf16.msra.mxu0 %v1321
      %1345 = vmatprep.subr.bf16.mxu0 0
      %1346 = vmatpush1.bf16.msra.mxu0 %v1322
      %1347 = vmatprep.subr.bf16.mxu0 0
      %1348 = vmatpush1.bf16.msra.mxu0 0
      %1349 = vmatprep.subr.bf16.mxu0 0
      %1350 = vmatpush1.bf16.msra.mxu0 0
      %1351 = vmatprep.subr.bf16.mxu0 0
      %1352 = vmatpush1.bf16.msra.mxu0 0
      %1353 = vmatprep.subr.bf16.mxu0 0
      %1354 = vmatpush1.bf16.msra.mxu0 0
      %1355 = vmatprep.subr.bf16.mxu0 0
      %1356 = vmatpush1.bf16.msra.mxu0 0
      %1357 = vmatprep.subr.bf16.mxu0 0
      %1358 = vmatpush1.bf16.msra.mxu0 0
      %1359 = vmatprep.subr.bf16.mxu0 0
      %1360 = vmatpush1.bf16.msra.mxu0 0
      %1361 = vmatprep.subr.bf16.mxu0 0
      %1362 = vmatpush1.bf16.msra.mxu0 0
      %1363 = vmatprep.mubr.bf16.mxu0 0
      %1364 = vmatmul.mubr.bf16.gmra.mrb[0].mxu0 %v1256
      %v1365 = vpop.f32.mrb[0].mxu0
      %v1366 = vadd.f32 %v1281, %v1365
      %v1367 = vpop.f32.mrb[0].mxu0
      %v1368 = vpop.f32.mrb[0].mxu0
      %v1369 = vadd.f32 %v1281, %v1368
      %v1370 = vpop.f32.mrb[0].mxu0
      %1371 = vmatprep.mubr.bf16.mxu0 0
      %1372 = vmatmul.mubr.bf16.gmra.mrb[0].mxu0 %v1257
      %v1373 = vpop.f32.mrb[0].mxu0
      %v1374 = vadd.f32 %v1281, %v1373
      %v1375 = vpop.f32.mrb[0].mxu0
      %v1376 = vpop.f32.mrb[0].mxu0
      %v1377 = vadd.f32 %v1281, %v1376
      %v1378 = vpop.f32.mrb[0].mxu0
      %1379 = vmatprep.mubr.bf16.mxu0 0
      %1380 = vmatmul.mubr.bf16.gmra.mrb[0].mxu0 %v1258
      %v1381 = vpop.f32.mrb[0].mxu0
      %v1382 = vadd.f32 %v1281, %v1381
      %v1383 = vpop.f32.mrb[0].mxu0
      %v1384 = vpop.f32.mrb[0].mxu0
      %v1385 = vadd.f32 %v1281, %v1384
      %v1386 = vpop.f32.mrb[0].mxu0
      %1387 = vmatprep.mubr.bf16.mxu0 0
      %1388 = vmatmul.mubr.bf16.gmra.mrb[0].mxu0 %v1259
      %v1389 = vpop.f32.mrb[0].mxu0
      %v1390 = vadd.f32 %v1281, %v1389
      %v1391 = vpop.f32.mrb[0].mxu0
      %v1392 = vpop.f32.mrb[0].mxu0
      %v1393 = vadd.f32 %v1281, %v1392
      %v1394 = vpop.f32.mrb[0].mxu0
      %1395 = vdwg.mxu0
      %v1396 = vld [vmem:[%s374] sm:$0xf]
      %v1397 = vld [vmem:[%s374 + $0x4] sm:$0xf]
      %v1398 = vld [vmem:[%s374 + $0x8] sm:$0xf]
      %v1399 = vld [vmem:[%s374 + $0xc] sm:$0xf]
      %v1400 = vld [vmem:[%s374 + $0x10] sm:$0xf]
      %v1401 = vld [vmem:[%s374 + $0x14] sm:$0xf]
      %v1402 = vld [vmem:[%s374 + $0x18] sm:$0xf]
      %v1403 = vld [vmem:[%s374 + $0x1c] sm:$0xf]
      %v1404 = vunpack.c.l.bf16 %v1396
      %v1405 = vunpack.c.l.bf16 %v1397
      %v1406 = vunpack.c.l.bf16 %v1398
      %v1407 = vunpack.c.l.bf16 %v1399
      %v1408 = vunpack.c.l.bf16 %v1400
      %v1409 = vunpack.c.l.bf16 %v1401
      %v1410 = vunpack.c.l.bf16 %v1402
      %v1411 = vunpack.c.l.bf16 %v1403
      %v1412 = vadd.f32 %v1366, %v1404
      %v1413 = vadd.f32 %v1369, %v1405
      %v1414 = vadd.f32 %v1374, %v1406
      %v1415 = vadd.f32 %v1377, %v1407
      %v1416 = vadd.f32 %v1382, %v1408
      %v1417 = vadd.f32 %v1385, %v1409
      %v1418 = vadd.f32 %v1390, %v1410
      %v1419 = vadd.f32 %v1393, %v1411
      %v1420 = vpack.c.bf16 %v1413, %v1412
      %v1421 = vpack.c.bf16 %v1415, %v1414
      %v1422 = vpack.c.bf16 %v1417, %v1416
      %v1423 = vpack.c.bf16 %v1419, %v1418
      %v1428 = vunpack.c.l.b16 %v1420
      %v1429 = vunpack.c.h.b16 %v1420
      %v1430 = vunpack.c.l.b16 %v1421
      %v1431 = vunpack.c.h.b16 %v1421
      %v1432 = vunpack.c.l.b16 %v1422
      %v1433 = vunpack.c.h.b16 %v1422
      %v1434 = vunpack.c.l.b16 %v1423
      %v1435 = vunpack.c.h.b16 %v1423
      %v1436 = vpack.c.b16 %v1428, %v1428
      %v1437 = vpack.c.b16 %v1429, %v1429
      %v1438 = vpack.c.b16 %v1430, %v1430
      %v1439 = vpack.c.b16 %v1431, %v1431
      %v1440 = vpack.c.b16 %v1432, %v1432
      %v1441 = vpack.c.b16 %v1433, %v1433
      %v1442 = vpack.c.b16 %v1434, %v1434
      %v1443 = vpack.c.b16 %v1435, %v1435
      %1452 = vst [vmem:[%s379] sm:$0xf] %v1436
      %1453 = vst [vmem:[%s379 + $0x4] sm:$0xf] %v1437
      %1454 = vst [vmem:[%s379 + $0x8] sm:$0xf] %v1438
      %1455 = vst [vmem:[%s379 + $0xc] sm:$0xf] %v1439
      %1456 = vst [vmem:[%s379 + $0x10] sm:$0xf] %v1440
      %1457 = vst [vmem:[%s379 + $0x14] sm:$0xf] %v1441
      %1458 = vst [vmem:[%s379 + $0x18] sm:$0xf] %v1442
      %1459 = vst [vmem:[%s379 + $0x1c] sm:$0xf] %v1443
      %p1460 = scmp.lt.s32.totalorder %s21, 1
      %s1461 = scalar_select %p1460, %s21, 1
      %s1462 = smul.addr %s1461, 8
      %s1463 = smul.addr %s1462, 4
      %s1464 = scalar_lea.vmem %s10, %s1463
      // Predicated region
      $region61: #{enetv2_forward.4} parent=59 // pred_check
        %p1465 = pneg %p259
      $region62: #{enetv2_forward.4} parent=59 // pred_check_branch
        %1467 = sbr.rel (%p1465) target = $region64
      $region63: #{enetv2_forward.4} parent=59 // pred_region
        _
      $region64: #{enetv2_forward.4} parent=59 // pred_fallthru
        _
    $region60: #{enetv2_forward.4} parent=5 // pred_fallthru
      _
    %p1468 = scmp.le.s32.totalorder 2, %s16
    // Predicated region
    $region65: #{enetv2_forward.4} parent=5 // pred_check
      %p1469 = pneg %p1468
    $region66: #{enetv2_forward.4} parent=5 // pred_check_branch
      %1471 = sbr.rel (%p1469) target = $region68
    $region67: #{enetv2_forward.4} parent=5 // pred_region
      %s1472 = ssub.s32 %s16, 2
      // Predicated region
      $region69: #{enetv2_forward.4} parent=67 // pred_check
        %p1473 = pneg %p265
      $region70: #{enetv2_forward.4} parent=67 // pred_check_branch
        %1475 = sbr.rel (%p1473) target = $region72
      $region71: #{enetv2_forward.4} parent=67 // pred_region
        %p1476 = scmp.lt.s32.totalorder %s22, 1
        %s1477 = scalar_select %p1476, %s22, 1
        %s1478 = smul.addr %s1477, 8
        %s1479 = smul.addr %s1478, 4
        %s1480 = scalar_lea.vmem %s10, %s1479
      $region72: #{enetv2_forward.4} parent=67 // pred_fallthru
        _
    $region68: #{enetv2_forward.4} parent=5 // pred_fallthru
      _
  $region6: #{enetv2_forward.4} parent=0 // loop_footer
    %s20 = sadd.s32 1, %s16
  $region7: #{enetv2_forward.4} parent=0 // loop_footer_branch
    %15 = sbr.rel target = $region3
  $region8: #{enetv2_forward.4} parent=0 // loop_exit
    _

</llo_original>
